<compile_context>
chip_gen: v5e
topology: v5e:2x2
jax: 0.10.0
libtpu: 0.0.40
codegen_flags: <defaults>
</compile_context>

<pallas_src>
import jax
import jax.numpy as jnp
from jax.experimental import pallas as pl
from jax.experimental.pallas import tpu as pltpu

LANE = 128
# MXU operand dtype (accumulation stays f32 via preferred_element_type).  Set to
# jnp.float32 to reproduce the reference near-exactly (at ~2x lower MXU throughput).
MXU_DTYPE = jnp.bfloat16


def _mm(a, b):
    return jnp.dot(a.astype(MXU_DTYPE), b.astype(MXU_DTYPE),
                   preferred_element_type=jnp.float32)


def _round_up(x, m):
    return (x + m - 1) // m * m


def _pad_axis(a, axis, target):
    pad = target - a.shape[axis]
    if pad == 0:
        return a
    widths = [(0, 0)] * a.ndim
    widths[axis] = (0, pad)
    return jnp.pad(a, widths)


def _pad2(w, rows, cols):
    return _pad_axis(_pad_axis(w, 0, rows), 1, cols)


def _spec(shape, index_map, single_buffer=False):
    """BlockSpec; grid-invariant blocks request single buffering when supported."""
    if single_buffer:
        try:
            return pl.BlockSpec(shape, index_map, pipeline_mode=pl.Buffered(1))
        except Exception:  # older JAX without pipeline_mode / Buffered: fall back
            pass
    return pl.BlockSpec(shape, index_map)


def _weight_spec(a):
    return _spec(a.shape, lambda b, t: (0, 0), single_buffer=True)


def _vmem_limit_bytes():
    # ~100 MiB on 128-MiB-VMEM chips (v5e/v6e); leave >= 8 MiB headroom on v7x (64 MiB).
    mib = 1024 * 1024
    try:
        cap = pltpu.get_tpu_info().vmem_capacity_bytes
        return int(min(100 * mib, max(cap - 8 * mib, 32 * mib)))
    except Exception:
        return 56 * mib  # safe on every current generation


# ----------------------- Kernel 1: linear_start + fused k/v ---------------------
def _kv_kernel(x_ref, ws, bs, wkv, bkv, kv_ref):
    x = x_ref[0]                                        # (tile_n, cin)
    feat = _mm(x, ws[...]) + bs[...]                    # (tile_n, dim_p) f32
    kv = _mm(feat, wkv[...]) + bkv[...]                 # (tile_n, 2*dim_p) f32
    kv_ref[0] = kv.astype(kv_ref.dtype)                 # stored bf16


def _kv_project(x, ws, bs, wkv, bkv, tile_n, vmem_limit):
    B, n_p, cin = x.shape
    dim2 = wkv.shape[1]
    nt = n_p // tile_n
    return pl.pallas_call(
        _kv_kernel,
        out_shape=jax.ShapeDtypeStruct((B, n_p, dim2), jnp.bfloat16),
        grid=(B, nt),
        in_specs=[pl.BlockSpec((1, tile_n, cin), lambda b, t: (b, t, 0)),
                  _weight_spec(ws), _weight_spec(bs),
                  _weight_spec(wkv), _weight_spec(bkv)],
        out_specs=pl.BlockSpec((1, tile_n, dim2), lambda b, t: (b, t, 0)),
        compiler_params=pltpu.CompilerParams(
            dimension_semantics=("parallel", "parallel"),
            vmem_limit_bytes=vmem_limit),
    )(x, ws, bs, wkv, bkv)


# ----------------- Kernel 2: point-transformer attention block ------------------
def _attn_block(x, idx, pos_rel, kv, pw, tile_n, chunk, cin_p, vmem_limit):
    B, n_p, cin = x.shape
    K = idx.shape[2]
    dim2 = kv.shape[2]
    nt = n_p // tile_n
    n_chunks = n_p // chunk

    def kernel(x_ref, idx_ref, prel_ref, kv_ref,
               ws, bs, wq, bq, w1, b1, w2, b2, w3, b3, w4, b4, we, be,
               y_ref):
        tn = x_ref.shape[1]
        dimp = wq.shape[1]

        # Hoist all weight loads out of the per-neighbour loop.
        wsv, bsv = ws[...], bs[...]
        wqv, bqv = wq[...], bq[...]
        w1v, b1v = w1[...], b1[...]
        w2v, b2v = w2[...], b2[...]
        w3v, b3v = w3[...], b3[...]
        w4v, b4v = w4[...], b4[...]
        wev, bev = we[...], be[...]

        # linear_start + query projection fused per tile: q never touches HBM.
        xv = x_ref[0]                                   # (tn, cin)
        feat = _mm(xv, wsv) + bsv                       # (tn, dimp)
        q = _mm(feat, wqv) + bqv                        # (tn, dimp)

        idx_all = idx_ref[0]                            # (tn, K) int32
        iota = jax.lax.broadcasted_iota(jnp.int32, (tn, chunk), 1)

        attn_js, vpe_js = [], []
        for j in range(K):                              # K is small and static
            idx_j = idx_all[:, j:j + 1]                 # (tn, 1)

            # Chunked one-hot gather of neighbour j's key/value rows from the
            # batch-resident bf16 kv block (bounded VMEM, MXU-friendly).
            def gstep(c, acc):
                start = pl.multiple_of(c * chunk, chunk)
                kv_c = kv_ref[0, pl.ds(start, chunk), :]             # (chunk, 2*dimp)
                onehot = (iota == (idx_j - c * chunk)).astype(MXU_DTYPE)
                return acc + jnp.dot(onehot, kv_c,
                                     preferred_element_type=jnp.float32)

            gat = jax.lax.fori_loop(0, n_chunks, gstep,
                                    jnp.zeros((tn, 2 * dimp), jnp.float32))
            k_j = gat[:, :dimp]
            v_j = gat[:, dimp:]

            # pos_mlp layer 1 (contraction dim 3) on the VPU, BN folded, ReLU,
            # then a lane-dense 1x1 conv on the MXU.
            pr = prel_ref[0, j]                         # (tn, 3)
            h = (pr[:, 0:1] * w1v[0:1, :] + pr[:, 1:2] * w1v[1:2, :]
                 + pr[:, 2:3] * w1v[2:3, :] + b1v)
            h = jnp.maximum(h, 0.0)
            pe_j = _mm(h, w2v) + b2v                    # (tn, dimp)

            # attn_mlp: 1x1 conv -> (BN folded) -> ReLU -> 1x1 conv
            a_in = q - k_j + pe_j
            h2 = jnp.maximum(_mm(a_in, w3v) + b3v, 0.0)
            attn_js.append(_mm(h2, w4v) + b4v)          # (tn, dimp)
            vpe_js.append(v_j + pe_j)

        # softmax over the K neighbours: elementwise max/exp/add across the K
        # per-neighbour tiles (VPU + EUP), normalisation via EUP reciprocal.
        m = attn_js[0]
        for j in range(1, K):
            m = jnp.maximum(m, attn_js[j])
        s = jnp.zeros_like(m)
        agg = jnp.zeros_like(m)
        for j in range(K):
            e = jnp.exp(attn_js[j] - m)
            s = s + e
            agg = agg + e * vpe_js[j]
        agg = agg * pl.reciprocal(s, approx=True)

        # linear_end (the residual with the identity input is added in the wrapper).
        y_ref[0] = _mm(agg, wev) + bev

    weights = [pw[k] for k in ("w_start", "b_start", "w_q", "b_q",
                               "w_pos1", "b_pos1", "w_pos2", "b_pos2",
                               "w_attn1", "b_attn1", "w_attn2", "b_attn2",
                               "w_end", "b_end")]
    return pl.pallas_call(
        kernel,
        out_shape=jax.ShapeDtypeStruct((B, n_p, cin_p), jnp.float32),
        grid=(B, nt),
        in_specs=([pl.BlockSpec((1, tile_n, cin), lambda b, t: (b, t, 0)),
                   pl.BlockSpec((1, tile_n, K), lambda b, t: (b, t, 0)),
                   pl.BlockSpec((1, K, tile_n, 3), lambda b, t: (b, 0, t, 0)),
                   _spec((1, n_p, dim2), lambda b, t: (b, 0, 0), single_buffer=True)]
                  + [_weight_spec(w) for w in weights]),
        out_specs=pl.BlockSpec((1, tile_n, cin_p), lambda b, t: (b, t, 0)),
        compiler_params=pltpu.CompilerParams(
            dimension_semantics=("parallel", "parallel"),
            vmem_limit_bytes=vmem_limit),
    )(x, idx, pos_rel, kv, *weights)


# ------------------------------- JAX glue ----------------------------------------
def _knn_idx(pos_bn3, k):
    # knn_points(pos, pos, K=k): indices of the K nearest points (incl. self).
    sq = jnp.sum(pos_bn3 * pos_bn3, axis=-1)
    d2 = sq[:, :, None] + sq[:, None, :] - 2.0 * jnp.einsum("bic,bjc->bij", pos_bn3, pos_bn3)
    return jax.lax.top_k(-d2, k)[1]                     # (B, n, K)


def _gather_chunk(n_p):
    for cand in (512, 256, 128):
        if n_p % cand == 0:
            return cand
    return n_p                                          # small n: single chunk (mult of 8)


def vtransformer_forward(x, pos, p, n_knn, tile_n=None):
    """x: (B, in_channel, n), pos: (B, 3, n)  -- PyTorch NCW.  Returns (B, in_channel, n)."""
    B, cin, n = x.shape
    dim = p["w_q"].shape[0]
    ph = p["w_pos1"].shape[1]
    ah = p["w_attn1"].shape[1]

    cin_p = _round_up(cin, LANE)
    dim_p = _round_up(dim, LANE)
    ph_p = _round_up(ph, LANE)
    ah_p = _round_up(ah, LANE)
    if tile_n is None:
        # 256 rows fill the 256x256 MXU on v6e/v7x; tiny inputs use the minimum
        # sublane multiple so there are still multiple grid steps to pipeline.
        tile_n = 256 if n >= 256 else (128 if n >= 128 else 8)
    n_p = _round_up(n, tile_n)
    chunk = _gather_chunk(n_p)
    vmem_limit = _vmem_limit_bytes()

    x_bnc = jnp.transpose(x, (0, 2, 1))                 # (B, n, cin)
    pos_bn3 = jnp.transpose(pos, (0, 2, 1))             # (B, n, 3)
    idx = _knn_idx(pos_bn3, n_knn)                      # (B, n, K), values in [0, n)

    # Relative neighbour positions precomputed in glue (only (B, K, n, 3)); this
    # removes the lane-sparse pos gather from the kernel entirely.
    pos_g = jax.vmap(lambda f, ix: f[ix])(pos_bn3, idx)                 # (B, n, K, 3)
    pos_rel = jnp.transpose(pos_bn3[:, :, None, :] - pos_g, (0, 2, 1, 3))  # (B, K, n, 3)

    # Pad the point axis to a tile multiple; x's channel axis stays unpadded.
    x_p = _pad_axis(x_bnc, 1, n_p)
    idx_p = _pad_axis(idx, 1, n_p)                      # padded rows gather point 0, discarded
    pos_rel_p = _pad_axis(pos_rel, 2, n_p)

    cast = lambda a: a.astype(MXU_DTYPE)
    pw = {
        "w_start": cast(_pad_axis(p["w_start"], 1, dim_p)),
        "b_start": _pad_axis(p["b_start"], 1, dim_p),
        "w_q": cast(_pad2(p["w_q"], dim_p, dim_p)), "b_q": _pad_axis(p["b_q"], 1, dim_p),
        "w_pos1": _pad_axis(p["w_pos1"], 1, ph_p),      # stays f32 (VPU FMA path)
        "b_pos1": _pad_axis(p["b_pos1"], 1, ph_p),
        "w_pos2": cast(_pad2(p["w_pos2"], ph_p, dim_p)), "b_pos2": _pad_axis(p["b_pos2"], 1, dim_p),
        "w_attn1": cast(_pad2(p["w_attn1"], dim_p, ah_p)), "b_attn1": _pad_axis(p["b_attn1"], 1, ah_p),
        "w_attn2": cast(_pad2(p["w_attn2"], ah_p, dim_p)), "b_attn2": _pad_axis(p["b_attn2"], 1, dim_p),
        "w_end": cast(_pad2(p["w_end"], dim_p, cin_p)), "b_end": _pad_axis(p["b_end"], 1, cin_p),
    }
    w_kv = cast(jnp.concatenate([_pad2(p["w_k"], dim_p, dim_p),
                                 _pad2(p["w_v"], dim_p, dim_p)], axis=1))
    b_kv = jnp.concatenate([_pad_axis(p["b_k"], 1, dim_p),
                            _pad_axis(p["b_v"], 1, dim_p)], axis=1)

    kv = _kv_project(x_p, pw["w_start"], pw["b_start"], w_kv, b_kv, tile_n, vmem_limit)
    y_p = _attn_block(x_p, idx_p, pos_rel_p, kv, pw, tile_n, chunk, cin_p, vmem_limit)
    y = y_p[:, :n, :cin] + x_bnc                        # residual with the identity input
    return jnp.transpose(y, (0, 2, 1))


# ------------------------------ parameters ---------------------------------------
def init_params(key, in_channel, dim, pos_hidden, attn_hidden, eps=1e-5):
    ks = jax.random.split(key, 18)
    w = lambda k, i, o: jax.random.normal(k, (i, o), jnp.float32) / jnp.sqrt(float(i))
    b = lambda k, o: jax.random.normal(k, (1, o), jnp.float32) * 0.05

    def bn_fold(wm, bm, c):
        # eval-mode BatchNorm folded exactly into the preceding 1x1 conv
        ar = jnp.arange(c, dtype=jnp.float32)
        gamma = 1.0 + 0.1 * jnp.cos(ar)
        beta = 0.1 * jnp.sin(ar)
        mean = 0.01 * ar
        var = 1.0 + 0.05 * jnp.sin(ar) ** 2
        scale = gamma / jnp.sqrt(var + eps)
        return wm * scale[None, :], (bm - mean[None, :]) * scale[None, :] + beta[None, :]

    p = {
        "w_start": w(ks[0], in_channel, dim), "b_start": b(ks[1], dim),
        "w_q": w(ks[2], dim, dim), "b_q": b(ks[3], dim),
        "w_k": w(ks[4], dim, dim), "b_k": b(ks[5], dim),
        "w_v": w(ks[6], dim, dim), "b_v": b(ks[7], dim),
        "w_pos2": w(ks[8], pos_hidden, dim), "b_pos2": b(ks[9], dim),
        "w_attn2": w(ks[10], attn_hidden, dim), "b_attn2": b(ks[11], dim),
        "w_end": w(ks[12], dim, in_channel), "b_end": b(ks[13], in_channel),
    }
    p["w_pos1"], p["b_pos1"] = bn_fold(w(ks[14], 3, pos_hidden), b(ks[15], pos_hidden), pos_hidden)
    p["w_attn1"], p["b_attn1"] = bn_fold(w(ks[16], dim, attn_hidden), b(ks[17], attn_hidden), attn_hidden)
    return p


# ------------------------- pure-JAX reference for checking -----------------------
def reference_forward(x, pos, p, n_knn):
    x_bnc = jnp.transpose(x, (0, 2, 1))
    pos_bn3 = jnp.transpose(pos, (0, 2, 1))
    feat = x_bnc @ p["w_start"] + p["b_start"]
    q = feat @ p["w_q"] + p["b_q"]
    k = feat @ p["w_k"] + p["b_k"]
    v = feat @ p["w_v"] + p["b_v"]
    idx = _knn_idx(pos_bn3, n_knn)
    gather = jax.vmap(lambda f, ix: f[ix])
    k_g, v_g, pos_g = gather(k, idx), gather(v, idx), gather(pos_bn3, idx)
    qk_rel = q[:, :, None, :] - k_g
    pos_rel = pos_bn3[:, :, None, :] - pos_g
    h = jax.nn.relu(pos_rel @ p["w_pos1"] + p["b_pos1"])
    pe = h @ p["w_pos2"] + p["b_pos2"]
    h2 = jax.nn.relu((qk_rel + pe) @ p["w_attn1"] + p["b_attn1"])
    attn = h2 @ p["w_attn2"] + p["b_attn2"]
    attn = jax.nn.softmax(attn, axis=2)
    agg = jnp.sum(attn * (v_g + pe), axis=2)
    y = agg @ p["w_end"] + p["b_end"] + x_bnc
    return jnp.transpose(y, (0, 2, 1))


if __name__ == "__main__":
    # Small shapes consistent with the module (vTransformer(in_channel, dim, n_knn, ...))
    B, in_channel, n = 2, 8, 16
    dim, n_knn, pos_hidden, attn_mult = 32, 4, 16, 2
    attn_hidden = dim * attn_mult

    key = jax.random.PRNGKey(0)
    kx, kp, kw = jax.random.split(key, 3)
    x = jax.random.normal(kx, (B, in_channel, n), jnp.float32)
    pos = jax.random.normal(kp, (B, 3, n), jnp.float32)
    params = init_params(kw, in_channel, dim, pos_hidden, attn_hidden)

    fwd = jax.jit(vtransformer_forward, static_argnums=(3,))
    y = fwd(x, pos, params, n_knn)
    y = jax.block_until_ready(y)
    assert y.shape == (B, in_channel, n)

    y_ref = reference_forward(x, pos, params, n_knn)
    err = float(jnp.max(jnp.abs(y - y_ref)))
    # MXU runs in bf16 (f32 accumulation) and softmax uses an approx reciprocal,
    # so compare with a bf16-appropriate tolerance.
    assert jnp.allclose(y, y_ref, atol=5e-2, rtol=5e-2), f"max abs err {err}"

    print("KERNEL_OK")
</pallas_src>

<mosaic_0001>
module attributes {stable_mosaic.version = 11 : i64} {
  func.func @_kv_kernel(%arg0: i32, %arg1: i32, %arg2: memref<1x8x8xf32, #tpu.memory_space<vmem>>, %arg3: memref<8x128xbf16, #tpu.memory_space<vmem>>, %arg4: memref<1x128xf32, #tpu.memory_space<vmem>>, %arg5: memref<128x256xbf16, #tpu.memory_space<vmem>>, %arg6: memref<1x256xf32, #tpu.memory_space<vmem>>, %arg7: memref<1x8x256xbf16, #tpu.memory_space<vmem>>) attributes {dimension_semantics = [#tpu.dimension_semantics<parallel>, #tpu.dimension_semantics<parallel>], iteration_bounds = array<i64: 2, 2>, scalar_prefetch = 0 : i64, scratch_operands = 0 : i64, tpu.core_type = #tpu.core_type<tc>, window_params = [{transform_indices = @transform_0, window_bounds = array<i64: 1, 8, 8>}, {pipeline_mode = #tpu.pipeline_mode<synchronous>, transform_indices = @transform_1, window_bounds = array<i64: 8, 128>}, {pipeline_mode = #tpu.pipeline_mode<synchronous>, transform_indices = @transform_2, window_bounds = array<i64: 1, 128>}, {pipeline_mode = #tpu.pipeline_mode<synchronous>, transform_indices = @transform_3, window_bounds = array<i64: 128, 256>}, {pipeline_mode = #tpu.pipeline_mode<synchronous>, transform_indices = @transform_4, window_bounds = array<i64: 1, 256>}, {transform_indices = @transform_5, window_bounds = array<i64: 1, 8, 256>}]} {
    %c0 = arith.constant 0 : index
    %c0_0 = arith.constant 0 : index
    %c0_1 = arith.constant 0 : index
    %0 = vector.load %arg2[%c0, %c0_0, %c0_1] : memref<1x8x8xf32, #tpu.memory_space<vmem>>, vector<1x8x8xf32>
    %1 = vector.shape_cast %0 : vector<1x8x8xf32> to vector<8x8xf32>
    %c0_2 = arith.constant 0 : index
    %c0_3 = arith.constant 0 : index
    %2 = vector.load %arg3[%c0_2, %c0_3] : memref<8x128xbf16, #tpu.memory_space<vmem>>, vector<8x128xbf16>
    %3 = arith.truncf %1 : vector<8x8xf32> to vector<8x8xbf16>
    %cst = arith.constant dense<0.000000e+00> : vector<8x128xf32>
    %4 = tpu.matmul %3, %2, %cst {dimension_numbers = #tpu.dot_dimension_numbers<[1], [0], [0], [1], [0, 0, 1, 1], [], []>} : vector<8x8xbf16>, vector<8x128xbf16>, vector<8x128xf32> -> vector<8x128xf32>
    %c0_4 = arith.constant 0 : index
    %c0_5 = arith.constant 0 : index
    %5 = vector.load %arg4[%c0_4, %c0_5] : memref<1x128xf32, #tpu.memory_space<vmem>>, vector<1x128xf32>
    %6 = vector.broadcast %5 : vector<1x128xf32> to vector<8x128xf32>
    %7 = arith.addf %4, %6 : vector<8x128xf32>
    %c0_6 = arith.constant 0 : index
    %c0_7 = arith.constant 0 : index
    %8 = vector.load %arg5[%c0_6, %c0_7] : memref<128x256xbf16, #tpu.memory_space<vmem>>, vector<128x256xbf16>
    %9 = arith.truncf %7 : vector<8x128xf32> to vector<8x128xbf16>
    %cst_8 = arith.constant dense<0.000000e+00> : vector<8x256xf32>
    %10 = tpu.matmul %9, %8, %cst_8 {dimension_numbers = #tpu.dot_dimension_numbers<[1], [0], [0], [1], [0, 0, 1, 1], [], []>} : vector<8x128xbf16>, vector<128x256xbf16>, vector<8x256xf32> -> vector<8x256xf32>
    %c0_9 = arith.constant 0 : index
    %c0_10 = arith.constant 0 : index
    %11 = vector.load %arg6[%c0_9, %c0_10] : memref<1x256xf32, #tpu.memory_space<vmem>>, vector<1x256xf32>
    %12 = vector.broadcast %11 : vector<1x256xf32> to vector<8x256xf32>
    %13 = arith.addf %10, %12 : vector<8x256xf32>
    %14 = arith.truncf %13 : vector<8x256xf32> to vector<8x256xbf16>
    %c0_11 = arith.constant 0 : index
    %c0_12 = arith.constant 0 : index
    %c0_13 = arith.constant 0 : index
    %15 = vector.load %arg7[%c0_11, %c0_12, %c0_13] : memref<1x8x256xbf16, #tpu.memory_space<vmem>>, vector<1x8x256xbf16>
    %16 = vector.shape_cast %15 : vector<1x8x256xbf16> to vector<8x256xbf16>
    %17 = vector.shape_cast %14 : vector<8x256xbf16> to vector<1x8x256xbf16>
    tpu.vector_store %arg7[%c0_11, %c0_12, %c0_13], %17 {strides = array<i32>} : memref<1x8x256xbf16, #tpu.memory_space<vmem>>, vector<1x8x256xbf16>,
    return
  }
  func.func @transform_0(%arg0: i32, %arg1: i32) -> (i32, i32, i32) {
    %c0_i32 = arith.constant 0 : i32
    %c0_i32_0 = arith.constant 0 : i32
    return %arg0, %arg1, %c0_i32 : i32, i32, i32
  }
  func.func @transform_1(%arg0: i32, %arg1: i32) -> (i32, i32) {
    %c0_i32 = arith.constant 0 : i32
    %c0_i32_0 = arith.constant 0 : i32
    %c0_i32_1 = arith.constant 0 : i32
    return %c0_i32, %c0_i32_0 : i32, i32
  }
  func.func @transform_2(%arg0: i32, %arg1: i32) -> (i32, i32) {
    %c0_i32 = arith.constant 0 : i32
    %c0_i32_0 = arith.constant 0 : i32
    %c0_i32_1 = arith.constant 0 : i32
    return %c0_i32, %c0_i32_0 : i32, i32
  }
  func.func @transform_3(%arg0: i32, %arg1: i32) -> (i32, i32) {
    %c0_i32 = arith.constant 0 : i32
    %c0_i32_0 = arith.constant 0 : i32
    %c0_i32_1 = arith.constant 0 : i32
    return %c0_i32, %c0_i32_0 : i32, i32
  }
  func.func @transform_4(%arg0: i32, %arg1: i32) -> (i32, i32) {
    %c0_i32 = arith.constant 0 : i32
    %c0_i32_0 = arith.constant 0 : i32
    %c0_i32_1 = arith.constant 0 : i32
    return %c0_i32, %c0_i32_0 : i32, i32
  }
  func.func @transform_5(%arg0: i32, %arg1: i32) -> (i32, i32, i32) {
    %c0_i32 = arith.constant 0 : i32
    %c0_i32_0 = arith.constant 0 : i32
    return %arg0, %arg1, %c0_i32 : i32, i32, i32
  }
}

module attributes {stable_mosaic.version = 11 : i64} {
  func.func @kernel(%arg0: i32, %arg1: i32, %arg2: memref<1x8x8xf32, #tpu.memory_space<vmem>>, %arg3: memref<1x8x4xi32, #tpu.memory_space<vmem>>, %arg4: memref<1x4x8x3xf32, #tpu.memory_space<vmem>>, %arg5: memref<1x16x256xbf16, #tpu.memory_space<vmem>>, %arg6: memref<8x128xbf16, #tpu.memory_space<vmem>>, %arg7: memref<1x128xf32, #tpu.memory_space<vmem>>, %arg8: memref<128x128xbf16, #tpu.memory_space<vmem>>, %arg9: memref<1x128xf32, #tpu.memory_space<vmem>>, %arg10: memref<3x128xf32, #tpu.memory_space<vmem>>, %arg11: memref<1x128xf32, #tpu.memory_space<vmem>>, %arg12: memref<128x128xbf16, #tpu.memory_space<vmem>>, %arg13: memref<1x128xf32, #tpu.memory_space<vmem>>, %arg14: memref<128x128xbf16, #tpu.memory_space<vmem>>, %arg15: memref<1x128xf32, #tpu.memory_space<vmem>>, %arg16: memref<128x128xbf16, #tpu.memory_space<vmem>>, %arg17: memref<1x128xf32, #tpu.memory_space<vmem>>, %arg18: memref<128x128xbf16, #tpu.memory_space<vmem>>, %arg19: memref<1x128xf32, #tpu.memory_space<vmem>>, %arg20: memref<1x8x128xf32, #tpu.memory_space<vmem>>) attributes {dimension_semantics = [#tpu.dimension_semantics<parallel>, #tpu.dimension_semantics<parallel>], iteration_bounds = array<i64: 2, 2>, scalar_prefetch = 0 : i64, scratch_operands = 0 : i64, tpu.core_type = #tpu.core_type<tc>, window_params = [{transform_indices = @transform_0, window_bounds = array<i64: 1, 8, 8>}, {transform_indices = @transform_1, window_bounds = array<i64: 1, 8, 4>}, {transform_indices = @transform_2, window_bounds = array<i64: 1, 4, 8, 3>}, {pipeline_mode = #tpu.pipeline_mode<synchronous>, transform_indices = @transform_3, window_bounds = array<i64: 1, 16, 256>}, {pipeline_mode = #tpu.pipeline_mode<synchronous>, transform_indices = @transform_4, window_bounds = array<i64: 8, 128>}, {pipeline_mode = #tpu.pipeline_mode<synchronous>, transform_indices = @transform_5, window_bounds = array<i64: 1, 128>}, {pipeline_mode = #tpu.pipeline_mode<synchronous>, transform_indices = @transform_6, window_bounds = array<i64: 128, 128>}, {pipeline_mode = #tpu.pipeline_mode<synchronous>, transform_indices = @transform_7, window_bounds = array<i64: 1, 128>}, {pipeline_mode = #tpu.pipeline_mode<synchronous>, transform_indices = @transform_8, window_bounds = array<i64: 3, 128>}, {pipeline_mode = #tpu.pipeline_mode<synchronous>, transform_indices = @transform_9, window_bounds = array<i64: 1, 128>}, {pipeline_mode = #tpu.pipeline_mode<synchronous>, transform_indices = @transform_10, window_bounds = array<i64: 128, 128>}, {pipeline_mode = #tpu.pipeline_mode<synchronous>, transform_indices = @transform_11, window_bounds = array<i64: 1, 128>}, {pipeline_mode = #tpu.pipeline_mode<synchronous>, transform_indices = @transform_12, window_bounds = array<i64: 128, 128>}, {pipeline_mode = #tpu.pipeline_mode<synchronous>, transform_indices = @transform_13, window_bounds = array<i64: 1, 128>}, {pipeline_mode = #tpu.pipeline_mode<synchronous>, transform_indices = @transform_14, window_bounds = array<i64: 128, 128>}, {pipeline_mode = #tpu.pipeline_mode<synchronous>, transform_indices = @transform_15, window_bounds = array<i64: 1, 128>}, {pipeline_mode = #tpu.pipeline_mode<synchronous>, transform_indices = @transform_16, window_bounds = array<i64: 128, 128>}, {pipeline_mode = #tpu.pipeline_mode<synchronous>, transform_indices = @transform_17, window_bounds = array<i64: 1, 128>}, {transform_indices = @transform_18, window_bounds = array<i64: 1, 8, 128>}]} {
    %c0 = arith.constant 0 : index
    %c0_0 = arith.constant 0 : index
    %0 = vector.load %arg6[%c0, %c0_0] : memref<8x128xbf16, #tpu.memory_space<vmem>>, vector<8x128xbf16>
    %c0_1 = arith.constant 0 : index
    %c0_2 = arith.constant 0 : index
    %1 = vector.load %arg7[%c0_1, %c0_2] : memref<1x128xf32, #tpu.memory_space<vmem>>, vector<1x128xf32>
    %c0_3 = arith.constant 0 : index
    %c0_4 = arith.constant 0 : index
    %2 = vector.load %arg8[%c0_3, %c0_4] : memref<128x128xbf16, #tpu.memory_space<vmem>>, vector<128x128xbf16>
    %c0_5 = arith.constant 0 : index
    %c0_6 = arith.constant 0 : index
    %3 = vector.load %arg9[%c0_5, %c0_6] : memref<1x128xf32, #tpu.memory_space<vmem>>, vector<1x128xf32>
    %c0_7 = arith.constant 0 : index
    %c0_8 = arith.constant 0 : index
    %4 = vector.load %arg10[%c0_7, %c0_8] : memref<3x128xf32, #tpu.memory_space<vmem>>, vector<3x128xf32>
    %c0_9 = arith.constant 0 : index
    %c0_10 = arith.constant 0 : index
    %5 = vector.load %arg11[%c0_9, %c0_10] : memref<1x128xf32, #tpu.memory_space<vmem>>, vector<1x128xf32>
    %c0_11 = arith.constant 0 : index
    %c0_12 = arith.constant 0 : index
    %6 = vector.load %arg12[%c0_11, %c0_12] : memref<128x128xbf16, #tpu.memory_space<vmem>>, vector<128x128xbf16>
    %c0_13 = arith.constant 0 : index
    %c0_14 = arith.constant 0 : index
    %7 = vector.load %arg13[%c0_13, %c0_14] : memref<1x128xf32, #tpu.memory_space<vmem>>, vector<1x128xf32>
    %c0_15 = arith.constant 0 : index
    %c0_16 = arith.constant 0 : index
    %8 = vector.load %arg14[%c0_15, %c0_16] : memref<128x128xbf16, #tpu.memory_space<vmem>>, vector<128x128xbf16>
    %c0_17 = arith.constant 0 : index
    %c0_18 = arith.constant 0 : index
    %9 = vector.load %arg15[%c0_17, %c0_18] : memref<1x128xf32, #tpu.memory_space<vmem>>, vector<1x128xf32>
    %c0_19 = arith.constant 0 : index
    %c0_20 = arith.constant 0 : index
    %10 = vector.load %arg16[%c0_19, %c0_20] : memref<128x128xbf16, #tpu.memory_space<vmem>>, vector<128x128xbf16>
    %c0_21 = arith.constant 0 : index
    %c0_22 = arith.constant 0 : index
    %11 = vector.load %arg17[%c0_21, %c0_22] : memref<1x128xf32, #tpu.memory_space<vmem>>, vector<1x128xf32>
    %c0_23 = arith.constant 0 : index
    %c0_24 = arith.constant 0 : index
    %12 = vector.load %arg18[%c0_23, %c0_24] : memref<128x128xbf16, #tpu.memory_space<vmem>>, vector<128x128xbf16>
    %c0_25 = arith.constant 0 : index
    %c0_26 = arith.constant 0 : index
    %13 = vector.load %arg19[%c0_25, %c0_26] : memref<1x128xf32, #tpu.memory_space<vmem>>, vector<1x128xf32>
    %c0_27 = arith.constant 0 : index
    %c0_28 = arith.constant 0 : index
    %c0_29 = arith.constant 0 : index
    %14 = vector.load %arg2[%c0_27, %c0_28, %c0_29] : memref<1x8x8xf32, #tpu.memory_space<vmem>>, vector<1x8x8xf32>
    %15 = vector.shape_cast %14 : vector<1x8x8xf32> to vector<8x8xf32>
    %16 = arith.truncf %15 : vector<8x8xf32> to vector<8x8xbf16>
    %cst = arith.constant dense<0.000000e+00> : vector<8x128xf32>
    %17 = tpu.matmul %16, %0, %cst {dimension_numbers = #tpu.dot_dimension_numbers<[1], [0], [0], [1], [0, 0, 1, 1], [], []>} : vector<8x8xbf16>, vector<8x128xbf16>, vector<8x128xf32> -> vector<8x128xf32>
    %18 = vector.broadcast %1 : vector<1x128xf32> to vector<8x128xf32>
    %19 = arith.addf %17, %18 : vector<8x128xf32>
    %20 = arith.truncf %19 : vector<8x128xf32> to vector<8x128xbf16>
    %cst_30 = arith.constant dense<0.000000e+00> : vector<8x128xf32>
    %21 = tpu.matmul %20, %2, %cst_30 {dimension_numbers = #tpu.dot_dimension_numbers<[1], [0], [0], [1], [0, 0, 1, 1], [], []>} : vector<8x128xbf16>, vector<128x128xbf16>, vector<8x128xf32> -> vector<8x128xf32>
    %22 = vector.broadcast %3 : vector<1x128xf32> to vector<8x128xf32>
    %23 = arith.addf %21, %22 : vector<8x128xf32>
    %c0_31 = arith.constant 0 : index
    %c0_32 = arith.constant 0 : index
    %c0_33 = arith.constant 0 : index
    %24 = vector.load %arg3[%c0_31, %c0_32, %c0_33] : memref<1x8x4xi32, #tpu.memory_space<vmem>>, vector<1x8x4xi32>
    %25 = vector.shape_cast %24 : vector<1x8x4xi32> to vector<8x4xi32>
    %26 = tpu.iota {dimensions = array<i32: 1>} : vector<8x16xi32>
    %27 = vector.extract_strided_slice %25 {offsets = [0, 0], sizes = [8, 1], strides = [1, 1]} : vector<8x4xi32> to vector<8x1xi32>
    %cst_34 = arith.constant 0.000000e+00 : f32
    %28 = vector.broadcast %cst_34 : f32 to vector<8x256xf32>
    %c0_i32 = arith.constant 0 : i32
    %c16_i32 = arith.constant 16 : i32
    %29 = arith.muli %c0_i32, %c16_i32 : i32
    %30 = tpu.assume_multiple %29, 16 : i32
    %c0_35 = arith.constant 0 : index
    %31 = arith.index_cast %30 : i32 to index
    %c0_36 = arith.constant 0 : index
    %32 = vector.load %arg5[%c0_35, %31, %c0_36] : memref<1x16x256xbf16, #tpu.memory_space<vmem>>, vector<1x16x256xbf16>
    %33 = vector.shape_cast %32 : vector<1x16x256xbf16> to vector<16x256xbf16>
    %c16_i32_37 = arith.constant 16 : i32
    %34 = arith.muli %c0_i32, %c16_i32_37 : i32
    %35 = vector.broadcast %34 : i32 to vector<8x1xi32>
    %36 = arith.subi %27, %35 : vector<8x1xi32>
    %37 = vector.broadcast %36 : vector<8x1xi32> to vector<8x16xi32>
    %38 = arith.cmpi eq, %26, %37 : vector<8x16xi32>
    %39 = arith.extui %38 : vector<8x16xi1> to vector<8x16xi32>
    %40 = arith.sitofp %39 : vector<8x16xi32> to vector<8x16xf32>
    %41 = arith.truncf %40 : vector<8x16xf32> to vector<8x16xbf16>
    %cst_38 = arith.constant dense<0.000000e+00> : vector<8x256xf32>
    %42 = tpu.matmul %41, %33, %cst_38 {dimension_numbers = #tpu.dot_dimension_numbers<[1], [0], [0], [1], [0, 0, 1, 1], [], []>} : vector<8x16xbf16>, vector<16x256xbf16>, vector<8x256xf32> -> vector<8x256xf32>
    %43 = arith.addf %28, %42 : vector<8x256xf32>
    %c1_i32 = arith.constant 1 : i32
    %44 = vector.extract_strided_slice %43 {offsets = [0, 0], sizes = [8, 128], strides = [1, 1]} : vector<8x256xf32> to vector<8x128xf32>
    %45 = vector.extract_strided_slice %43 {offsets = [0, 128], sizes = [8, 128], strides = [1, 1]} : vector<8x256xf32> to vector<8x128xf32>
    %c0_39 = arith.constant 0 : index
    %c0_40 = arith.constant 0 : index
    %c0_41 = arith.constant 0 : index
    %c0_42 = arith.constant 0 : index
    %46 = vector.load %arg4[%c0_39, %c0_40, %c0_41, %c0_42] : memref<1x4x8x3xf32, #tpu.memory_space<vmem>>, vector<1x1x8x3xf32>
    %47 = vector.shape_cast %46 : vector<1x1x8x3xf32> to vector<8x3xf32>
    %48 = vector.extract_strided_slice %47 {offsets = [0, 0], sizes = [8, 1], strides = [1, 1]} : vector<8x3xf32> to vector<8x1xf32>
    %49 = vector.extract_strided_slice %4 {offsets = [0, 0], sizes = [1, 128], strides = [1, 1]} : vector<3x128xf32> to vector<1x128xf32>
    %50 = vector.broadcast %48 : vector<8x1xf32> to vector<8x128xf32>
    %51 = vector.broadcast %49 : vector<1x128xf32> to vector<8x128xf32>
    %52 = arith.mulf %50, %51 : vector<8x128xf32>
    %53 = vector.extract_strided_slice %47 {offsets = [0, 1], sizes = [8, 1], strides = [1, 1]} : vector<8x3xf32> to vector<8x1xf32>
    %54 = vector.extract_strided_slice %4 {offsets = [1, 0], sizes = [1, 128], strides = [1, 1]} : vector<3x128xf32> to vector<1x128xf32>
    %55 = vector.broadcast %53 : vector<8x1xf32> to vector<8x128xf32>
    %56 = vector.broadcast %54 : vector<1x128xf32> to vector<8x128xf32>
    %57 = arith.mulf %55, %56 : vector<8x128xf32>
    %58 = arith.addf %52, %57 : vector<8x128xf32>
    %59 = vector.extract_strided_slice %47 {offsets = [0, 2], sizes = [8, 1], strides = [1, 1]} : vector<8x3xf32> to vector<8x1xf32>
    %60 = vector.extract_strided_slice %4 {offsets = [2, 0], sizes = [1, 128], strides = [1, 1]} : vector<3x128xf32> to vector<1x128xf32>
    %61 = vector.broadcast %59 : vector<8x1xf32> to vector<8x128xf32>
    %62 = vector.broadcast %60 : vector<1x128xf32> to vector<8x128xf32>
    %63 = arith.mulf %61, %62 : vector<8x128xf32>
    %64 = arith.addf %58, %63 : vector<8x128xf32>
    %65 = vector.broadcast %5 : vector<1x128xf32> to vector<8x128xf32>
    %66 = arith.addf %64, %65 : vector<8x128xf32>
    %cst_43 = arith.constant 0.000000e+00 : f32
    %67 = vector.broadcast %cst_43 : f32 to vector<8x128xf32>
    %68 = arith.maximumf %66, %67 : vector<8x128xf32>
    %69 = arith.truncf %68 : vector<8x128xf32> to vector<8x128xbf16>
    %cst_44 = arith.constant dense<0.000000e+00> : vector<8x128xf32>
    %70 = tpu.matmul %69, %6, %cst_44 {dimension_numbers = #tpu.dot_dimension_numbers<[1], [0], [0], [1], [0, 0, 1, 1], [], []>} : vector<8x128xbf16>, vector<128x128xbf16>, vector<8x128xf32> -> vector<8x128xf32>
    %71 = vector.broadcast %7 : vector<1x128xf32> to vector<8x128xf32>
    %72 = arith.addf %70, %71 : vector<8x128xf32>
    %73 = arith.subf %23, %44 : vector<8x128xf32>
    %74 = arith.addf %73, %72 : vector<8x128xf32>
    %75 = arith.truncf %74 : vector<8x128xf32> to vector<8x128xbf16>
    %cst_45 = arith.constant dense<0.000000e+00> : vector<8x128xf32>
    %76 = tpu.matmul %75, %8, %cst_45 {dimension_numbers = #tpu.dot_dimension_numbers<[1], [0], [0], [1], [0, 0, 1, 1], [], []>} : vector<8x128xbf16>, vector<128x128xbf16>, vector<8x128xf32> -> vector<8x128xf32>
    %77 = vector.broadcast %9 : vector<1x128xf32> to vector<8x128xf32>
    %78 = arith.addf %76, %77 : vector<8x128xf32>
    %cst_46 = arith.constant 0.000000e+00 : f32
    %79 = vector.broadcast %cst_46 : f32 to vector<8x128xf32>
    %80 = arith.maximumf %78, %79 : vector<8x128xf32>
    %81 = arith.truncf %80 : vector<8x128xf32> to vector<8x128xbf16>
    %cst_47 = arith.constant dense<0.000000e+00> : vector<8x128xf32>
    %82 = tpu.matmul %81, %10, %cst_47 {dimension_numbers = #tpu.dot_dimension_numbers<[1], [0], [0], [1], [0, 0, 1, 1], [], []>} : vector<8x128xbf16>, vector<128x128xbf16>, vector<8x128xf32> -> vector<8x128xf32>
    %83 = vector.broadcast %11 : vector<1x128xf32> to vector<8x128xf32>
    %84 = arith.addf %82, %83 : vector<8x128xf32>
    %85 = arith.addf %45, %72 : vector<8x128xf32>
    %86 = vector.extract_strided_slice %25 {offsets = [0, 1], sizes = [8, 1], strides = [1, 1]} : vector<8x4xi32> to vector<8x1xi32>
    %cst_48 = arith.constant 0.000000e+00 : f32
    %87 = vector.broadcast %cst_48 : f32 to vector<8x256xf32>
    %c0_i32_49 = arith.constant 0 : i32
    %c16_i32_50 = arith.constant 16 : i32
    %88 = arith.muli %c0_i32_49, %c16_i32_50 : i32
    %89 = tpu.assume_multiple %88, 16 : i32
    %c0_51 = arith.constant 0 : index
    %90 = arith.index_cast %89 : i32 to index
    %c0_52 = arith.constant 0 : index
    %91 = vector.load %arg5[%c0_51, %90, %c0_52] : memref<1x16x256xbf16, #tpu.memory_space<vmem>>, vector<1x16x256xbf16>
    %92 = vector.shape_cast %91 : vector<1x16x256xbf16> to vector<16x256xbf16>
    %c16_i32_53 = arith.constant 16 : i32
    %93 = arith.muli %c0_i32_49, %c16_i32_53 : i32
    %94 = vector.broadcast %93 : i32 to vector<8x1xi32>
    %95 = arith.subi %86, %94 : vector<8x1xi32>
    %96 = vector.broadcast %95 : vector<8x1xi32> to vector<8x16xi32>
    %97 = arith.cmpi eq, %26, %96 : vector<8x16xi32>
    %98 = arith.extui %97 : vector<8x16xi1> to vector<8x16xi32>
    %99 = arith.sitofp %98 : vector<8x16xi32> to vector<8x16xf32>
    %100 = arith.truncf %99 : vector<8x16xf32> to vector<8x16xbf16>
    %cst_54 = arith.constant dense<0.000000e+00> : vector<8x256xf32>
    %101 = tpu.matmul %100, %92, %cst_54 {dimension_numbers = #tpu.dot_dimension_numbers<[1], [0], [0], [1], [0, 0, 1, 1], [], []>} : vector<8x16xbf16>, vector<16x256xbf16>, vector<8x256xf32> -> vector<8x256xf32>
    %102 = arith.addf %87, %101 : vector<8x256xf32>
    %c1_i32_55 = arith.constant 1 : i32
    %103 = vector.extract_strided_slice %102 {offsets = [0, 0], sizes = [8, 128], strides = [1, 1]} : vector<8x256xf32> to vector<8x128xf32>
    %104 = vector.extract_strided_slice %102 {offsets = [0, 128], sizes = [8, 128], strides = [1, 1]} : vector<8x256xf32> to vector<8x128xf32>
    %c0_56 = arith.constant 0 : index
    %c1 = arith.constant 1 : index
    %c0_57 = arith.constant 0 : index
    %c0_58 = arith.constant 0 : index
    %105 = vector.load %arg4[%c0_56, %c1, %c0_57, %c0_58] : memref<1x4x8x3xf32, #tpu.memory_space<vmem>>, vector<1x1x8x3xf32>
    %106 = vector.shape_cast %105 : vector<1x1x8x3xf32> to vector<8x3xf32>
    %107 = vector.extract_strided_slice %106 {offsets = [0, 0], sizes = [8, 1], strides = [1, 1]} : vector<8x3xf32> to vector<8x1xf32>
    %108 = vector.extract_strided_slice %4 {offsets = [0, 0], sizes = [1, 128], strides = [1, 1]} : vector<3x128xf32> to vector<1x128xf32>
    %109 = vector.broadcast %107 : vector<8x1xf32> to vector<8x128xf32>
    %110 = vector.broadcast %108 : vector<1x128xf32> to vector<8x128xf32>
    %111 = arith.mulf %109, %110 : vector<8x128xf32>
    %112 = vector.extract_strided_slice %106 {offsets = [0, 1], sizes = [8, 1], strides = [1, 1]} : vector<8x3xf32> to vector<8x1xf32>
    %113 = vector.extract_strided_slice %4 {offsets = [1, 0], sizes = [1, 128], strides = [1, 1]} : vector<3x128xf32> to vector<1x128xf32>
    %114 = vector.broadcast %112 : vector<8x1xf32> to vector<8x128xf32>
    %115 = vector.broadcast %113 : vector<1x128xf32> to vector<8x128xf32>
    %116 = arith.mulf %114, %115 : vector<8x128xf32>
    %117 = arith.addf %111, %116 : vector<8x128xf32>
    %118 = vector.extract_strided_slice %106 {offsets = [0, 2], sizes = [8, 1], strides = [1, 1]} : vector<8x3xf32> to vector<8x1xf32>
    %119 = vector.extract_strided_slice %4 {offsets = [2, 0], sizes = [1, 128], strides = [1, 1]} : vector<3x128xf32> to vector<1x128xf32>
    %120 = vector.broadcast %118 : vector<8x1xf32> to vector<8x128xf32>
    %121 = vector.broadcast %119 : vector<1x128xf32> to vector<8x128xf32>
    %122 = arith.mulf %120, %121 : vector<8x128xf32>
    %123 = arith.addf %117, %122 : vector<8x128xf32>
    %124 = vector.broadcast %5 : vector<1x128xf32> to vector<8x128xf32>
    %125 = arith.addf %123, %124 : vector<8x128xf32>
    %cst_59 = arith.constant 0.000000e+00 : f32
    %126 = vector.broadcast %cst_59 : f32 to vector<8x128xf32>
    %127 = arith.maximumf %125, %126 : vector<8x128xf32>
    %128 = arith.truncf %127 : vector<8x128xf32> to vector<8x128xbf16>
    %cst_60 = arith.constant dense<0.000000e+00> : vector<8x128xf32>
    %129 = tpu.matmul %128, %6, %cst_60 {dimension_numbers = #tpu.dot_dimension_numbers<[1], [0], [0], [1], [0, 0, 1, 1], [], []>} : vector<8x128xbf16>, vector<128x128xbf16>, vector<8x128xf32> -> vector<8x128xf32>
    %130 = vector.broadcast %7 : vector<1x128xf32> to vector<8x128xf32>
    %131 = arith.addf %129, %130 : vector<8x128xf32>
    %132 = arith.subf %23, %103 : vector<8x128xf32>
    %133 = arith.addf %132, %131 : vector<8x128xf32>
    %134 = arith.truncf %133 : vector<8x128xf32> to vector<8x128xbf16>
    %cst_61 = arith.constant dense<0.000000e+00> : vector<8x128xf32>
    %135 = tpu.matmul %134, %8, %cst_61 {dimension_numbers = #tpu.dot_dimension_numbers<[1], [0], [0], [1], [0, 0, 1, 1], [], []>} : vector<8x128xbf16>, vector<128x128xbf16>, vector<8x128xf32> -> vector<8x128xf32>
    %136 = vector.broadcast %9 : vector<1x128xf32> to vector<8x128xf32>
    %137 = arith.addf %135, %136 : vector<8x128xf32>
    %cst_62 = arith.constant 0.000000e+00 : f32
    %138 = vector.broadcast %cst_62 : f32 to vector<8x128xf32>
    %139 = arith.maximumf %137, %138 : vector<8x128xf32>
    %140 = arith.truncf %139 : vector<8x128xf32> to vector<8x128xbf16>
    %cst_63 = arith.constant dense<0.000000e+00> : vector<8x128xf32>
    %141 = tpu.matmul %140, %10, %cst_63 {dimension_numbers = #tpu.dot_dimension_numbers<[1], [0], [0], [1], [0, 0, 1, 1], [], []>} : vector<8x128xbf16>, vector<128x128xbf16>, vector<8x128xf32> -> vector<8x128xf32>
    %142 = vector.broadcast %11 : vector<1x128xf32> to vector<8x128xf32>
    %143 = arith.addf %141, %142 : vector<8x128xf32>
    %144 = arith.addf %104, %131 : vector<8x128xf32>
    %145 = vector.extract_strided_slice %25 {offsets = [0, 2], sizes = [8, 1], strides = [1, 1]} : vector<8x4xi32> to vector<8x1xi32>
    %cst_64 = arith.constant 0.000000e+00 : f32
    %146 = vector.broadcast %cst_64 : f32 to vector<8x256xf32>
    %c0_i32_65 = arith.constant 0 : i32
    %c16_i32_66 = arith.constant 16 : i32
    %147 = arith.muli %c0_i32_65, %c16_i32_66 : i32
    %148 = tpu.assume_multiple %147, 16 : i32
    %c0_67 = arith.constant 0 : index
    %149 = arith.index_cast %148 : i32 to index
    %c0_68 = arith.constant 0 : index
    %150 = vector.load %arg5[%c0_67, %149, %c0_68] : memref<1x16x256xbf16, #tpu.memory_space<vmem>>, vector<1x16x256xbf16>
    %151 = vector.shape_cast %150 : vector<1x16x256xbf16> to vector<16x256xbf16>
    %c16_i32_69 = arith.constant 16 : i32
    %152 = arith.muli %c0_i32_65, %c16_i32_69 : i32
    %153 = vector.broadcast %152 : i32 to vector<8x1xi32>
    %154 = arith.subi %145, %153 : vector<8x1xi32>
    %155 = vector.broadcast %154 : vector<8x1xi32> to vector<8x16xi32>
    %156 = arith.cmpi eq, %26, %155 : vector<8x16xi32>
    %157 = arith.extui %156 : vector<8x16xi1> to vector<8x16xi32>
    %158 = arith.sitofp %157 : vector<8x16xi32> to vector<8x16xf32>
    %159 = arith.truncf %158 : vector<8x16xf32> to vector<8x16xbf16>
    %cst_70 = arith.constant dense<0.000000e+00> : vector<8x256xf32>
    %160 = tpu.matmul %159, %151, %cst_70 {dimension_numbers = #tpu.dot_dimension_numbers<[1], [0], [0], [1], [0, 0, 1, 1], [], []>} : vector<8x16xbf16>, vector<16x256xbf16>, vector<8x256xf32> -> vector<8x256xf32>
    %161 = arith.addf %146, %160 : vector<8x256xf32>
    %c1_i32_71 = arith.constant 1 : i32
    %162 = vector.extract_strided_slice %161 {offsets = [0, 0], sizes = [8, 128], strides = [1, 1]} : vector<8x256xf32> to vector<8x128xf32>
    %163 = vector.extract_strided_slice %161 {offsets = [0, 128], sizes = [8, 128], strides = [1, 1]} : vector<8x256xf32> to vector<8x128xf32>
    %c0_72 = arith.constant 0 : index
    %c2 = arith.constant 2 : index
    %c0_73 = arith.constant 0 : index
    %c0_74 = arith.constant 0 : index
    %164 = vector.load %arg4[%c0_72, %c2, %c0_73, %c0_74] : memref<1x4x8x3xf32, #tpu.memory_space<vmem>>, vector<1x1x8x3xf32>
    %165 = vector.shape_cast %164 : vector<1x1x8x3xf32> to vector<8x3xf32>
    %166 = vector.extract_strided_slice %165 {offsets = [0, 0], sizes = [8, 1], strides = [1, 1]} : vector<8x3xf32> to vector<8x1xf32>
    %167 = vector.extract_strided_slice %4 {offsets = [0, 0], sizes = [1, 128], strides = [1, 1]} : vector<3x128xf32> to vector<1x128xf32>
    %168 = vector.broadcast %166 : vector<8x1xf32> to vector<8x128xf32>
    %169 = vector.broadcast %167 : vector<1x128xf32> to vector<8x128xf32>
    %170 = arith.mulf %168, %169 : vector<8x128xf32>
    %171 = vector.extract_strided_slice %165 {offsets = [0, 1], sizes = [8, 1], strides = [1, 1]} : vector<8x3xf32> to vector<8x1xf32>
    %172 = vector.extract_strided_slice %4 {offsets = [1, 0], sizes = [1, 128], strides = [1, 1]} : vector<3x128xf32> to vector<1x128xf32>
    %173 = vector.broadcast %171 : vector<8x1xf32> to vector<8x128xf32>
    %174 = vector.broadcast %172 : vector<1x128xf32> to vector<8x128xf32>
    %175 = arith.mulf %173, %174 : vector<8x128xf32>
    %176 = arith.addf %170, %175 : vector<8x128xf32>
    %177 = vector.extract_strided_slice %165 {offsets = [0, 2], sizes = [8, 1], strides = [1, 1]} : vector<8x3xf32> to vector<8x1xf32>
    %178 = vector.extract_strided_slice %4 {offsets = [2, 0], sizes = [1, 128], strides = [1, 1]} : vector<3x128xf32> to vector<1x128xf32>
    %179 = vector.broadcast %177 : vector<8x1xf32> to vector<8x128xf32>
    %180 = vector.broadcast %178 : vector<1x128xf32> to vector<8x128xf32>
    %181 = arith.mulf %179, %180 : vector<8x128xf32>
    %182 = arith.addf %176, %181 : vector<8x128xf32>
    %183 = vector.broadcast %5 : vector<1x128xf32> to vector<8x128xf32>
    %184 = arith.addf %182, %183 : vector<8x128xf32>
    %cst_75 = arith.constant 0.000000e+00 : f32
    %185 = vector.broadcast %cst_75 : f32 to vector<8x128xf32>
    %186 = arith.maximumf %184, %185 : vector<8x128xf32>
    %187 = arith.truncf %186 : vector<8x128xf32> to vector<8x128xbf16>
    %cst_76 = arith.constant dense<0.000000e+00> : vector<8x128xf32>
    %188 = tpu.matmul %187, %6, %cst_76 {dimension_numbers = #tpu.dot_dimension_numbers<[1], [0], [0], [1], [0, 0, 1, 1], [], []>} : vector<8x128xbf16>, vector<128x128xbf16>, vector<8x128xf32> -> vector<8x128xf32>
    %189 = vector.broadcast %7 : vector<1x128xf32> to vector<8x128xf32>
    %190 = arith.addf %188, %189 : vector<8x128xf32>
    %191 = arith.subf %23, %162 : vector<8x128xf32>
    %192 = arith.addf %191, %190 : vector<8x128xf32>
    %193 = arith.truncf %192 : vector<8x128xf32> to vector<8x128xbf16>
    %cst_77 = arith.constant dense<0.000000e+00> : vector<8x128xf32>
    %194 = tpu.matmul %193, %8, %cst_77 {dimension_numbers = #tpu.dot_dimension_numbers<[1], [0], [0], [1], [0, 0, 1, 1], [], []>} : vector<8x128xbf16>, vector<128x128xbf16>, vector<8x128xf32> -> vector<8x128xf32>
    %195 = vector.broadcast %9 : vector<1x128xf32> to vector<8x128xf32>
    %196 = arith.addf %194, %195 : vector<8x128xf32>
    %cst_78 = arith.constant 0.000000e+00 : f32
    %197 = vector.broadcast %cst_78 : f32 to vector<8x128xf32>
    %198 = arith.maximumf %196, %197 : vector<8x128xf32>
    %199 = arith.truncf %198 : vector<8x128xf32> to vector<8x128xbf16>
    %cst_79 = arith.constant dense<0.000000e+00> : vector<8x128xf32>
    %200 = tpu.matmul %199, %10, %cst_79 {dimension_numbers = #tpu.dot_dimension_numbers<[1], [0], [0], [1], [0, 0, 1, 1], [], []>} : vector<8x128xbf16>, vector<128x128xbf16>, vector<8x128xf32> -> vector<8x128xf32>
    %201 = vector.broadcast %11 : vector<1x128xf32> to vector<8x128xf32>
    %202 = arith.addf %200, %201 : vector<8x128xf32>
    %203 = arith.addf %163, %190 : vector<8x128xf32>
    %204 = vector.extract_strided_slice %25 {offsets = [0, 3], sizes = [8, 1], strides = [1, 1]} : vector<8x4xi32> to vector<8x1xi32>
    %cst_80 = arith.constant 0.000000e+00 : f32
    %205 = vector.broadcast %cst_80 : f32 to vector<8x256xf32>
    %c0_i32_81 = arith.constant 0 : i32
    %c16_i32_82 = arith.constant 16 : i32
    %206 = arith.muli %c0_i32_81, %c16_i32_82 : i32
    %207 = tpu.assume_multiple %206, 16 : i32
    %c0_83 = arith.constant 0 : index
    %208 = arith.index_cast %207 : i32 to index
    %c0_84 = arith.constant 0 : index
    %209 = vector.load %arg5[%c0_83, %208, %c0_84] : memref<1x16x256xbf16, #tpu.memory_space<vmem>>, vector<1x16x256xbf16>
    %210 = vector.shape_cast %209 : vector<1x16x256xbf16> to vector<16x256xbf16>
    %c16_i32_85 = arith.constant 16 : i32
    %211 = arith.muli %c0_i32_81, %c16_i32_85 : i32
    %212 = vector.broadcast %211 : i32 to vector<8x1xi32>
    %213 = arith.subi %204, %212 : vector<8x1xi32>
    %214 = vector.broadcast %213 : vector<8x1xi32> to vector<8x16xi32>
    %215 = arith.cmpi eq, %26, %214 : vector<8x16xi32>
    %216 = arith.extui %215 : vector<8x16xi1> to vector<8x16xi32>
    %217 = arith.sitofp %216 : vector<8x16xi32> to vector<8x16xf32>
    %218 = arith.truncf %217 : vector<8x16xf32> to vector<8x16xbf16>
    %cst_86 = arith.constant dense<0.000000e+00> : vector<8x256xf32>
    %219 = tpu.matmul %218, %210, %cst_86 {dimension_numbers = #tpu.dot_dimension_numbers<[1], [0], [0], [1], [0, 0, 1, 1], [], []>} : vector<8x16xbf16>, vector<16x256xbf16>, vector<8x256xf32> -> vector<8x256xf32>
    %220 = arith.addf %205, %219 : vector<8x256xf32>
    %c1_i32_87 = arith.constant 1 : i32
    %221 = vector.extract_strided_slice %220 {offsets = [0, 0], sizes = [8, 128], strides = [1, 1]} : vector<8x256xf32> to vector<8x128xf32>
    %222 = vector.extract_strided_slice %220 {offsets = [0, 128], sizes = [8, 128], strides = [1, 1]} : vector<8x256xf32> to vector<8x128xf32>
    %c0_88 = arith.constant 0 : index
    %c3 = arith.constant 3 : index
    %c0_89 = arith.constant 0 : index
    %c0_90 = arith.constant 0 : index
    %223 = vector.load %arg4[%c0_88, %c3, %c0_89, %c0_90] : memref<1x4x8x3xf32, #tpu.memory_space<vmem>>, vector<1x1x8x3xf32>
    %224 = vector.shape_cast %223 : vector<1x1x8x3xf32> to vector<8x3xf32>
    %225 = vector.extract_strided_slice %224 {offsets = [0, 0], sizes = [8, 1], strides = [1, 1]} : vector<8x3xf32> to vector<8x1xf32>
    %226 = vector.extract_strided_slice %4 {offsets = [0, 0], sizes = [1, 128], strides = [1, 1]} : vector<3x128xf32> to vector<1x128xf32>
    %227 = vector.broadcast %225 : vector<8x1xf32> to vector<8x128xf32>
    %228 = vector.broadcast %226 : vector<1x128xf32> to vector<8x128xf32>
    %229 = arith.mulf %227, %228 : vector<8x128xf32>
    %230 = vector.extract_strided_slice %224 {offsets = [0, 1], sizes = [8, 1], strides = [1, 1]} : vector<8x3xf32> to vector<8x1xf32>
    %231 = vector.extract_strided_slice %4 {offsets = [1, 0], sizes = [1, 128], strides = [1, 1]} : vector<3x128xf32> to vector<1x128xf32>
    %232 = vector.broadcast %230 : vector<8x1xf32> to vector<8x128xf32>
    %233 = vector.broadcast %231 : vector<1x128xf32> to vector<8x128xf32>
    %234 = arith.mulf %232, %233 : vector<8x128xf32>
    %235 = arith.addf %229, %234 : vector<8x128xf32>
    %236 = vector.extract_strided_slice %224 {offsets = [0, 2], sizes = [8, 1], strides = [1, 1]} : vector<8x3xf32> to vector<8x1xf32>
    %237 = vector.extract_strided_slice %4 {offsets = [2, 0], sizes = [1, 128], strides = [1, 1]} : vector<3x128xf32> to vector<1x128xf32>
    %238 = vector.broadcast %236 : vector<8x1xf32> to vector<8x128xf32>
    %239 = vector.broadcast %237 : vector<1x128xf32> to vector<8x128xf32>
    %240 = arith.mulf %238, %239 : vector<8x128xf32>
    %241 = arith.addf %235, %240 : vector<8x128xf32>
    %242 = vector.broadcast %5 : vector<1x128xf32> to vector<8x128xf32>
    %243 = arith.addf %241, %242 : vector<8x128xf32>
    %cst_91 = arith.constant 0.000000e+00 : f32
    %244 = vector.broadcast %cst_91 : f32 to vector<8x128xf32>
    %245 = arith.maximumf %243, %244 : vector<8x128xf32>
    %246 = arith.truncf %245 : vector<8x128xf32> to vector<8x128xbf16>
    %cst_92 = arith.constant dense<0.000000e+00> : vector<8x128xf32>
    %247 = tpu.matmul %246, %6, %cst_92 {dimension_numbers = #tpu.dot_dimension_numbers<[1], [0], [0], [1], [0, 0, 1, 1], [], []>} : vector<8x128xbf16>, vector<128x128xbf16>, vector<8x128xf32> -> vector<8x128xf32>
    %248 = vector.broadcast %7 : vector<1x128xf32> to vector<8x128xf32>
    %249 = arith.addf %247, %248 : vector<8x128xf32>
    %250 = arith.subf %23, %221 : vector<8x128xf32>
    %251 = arith.addf %250, %249 : vector<8x128xf32>
    %252 = arith.truncf %251 : vector<8x128xf32> to vector<8x128xbf16>
    %cst_93 = arith.constant dense<0.000000e+00> : vector<8x128xf32>
    %253 = tpu.matmul %252, %8, %cst_93 {dimension_numbers = #tpu.dot_dimension_numbers<[1], [0], [0], [1], [0, 0, 1, 1], [], []>} : vector<8x128xbf16>, vector<128x128xbf16>, vector<8x128xf32> -> vector<8x128xf32>
    %254 = vector.broadcast %9 : vector<1x128xf32> to vector<8x128xf32>
    %255 = arith.addf %253, %254 : vector<8x128xf32>
    %cst_94 = arith.constant 0.000000e+00 : f32
    %256 = vector.broadcast %cst_94 : f32 to vector<8x128xf32>
    %257 = arith.maximumf %255, %256 : vector<8x128xf32>
    %258 = arith.truncf %257 : vector<8x128xf32> to vector<8x128xbf16>
    %cst_95 = arith.constant dense<0.000000e+00> : vector<8x128xf32>
    %259 = tpu.matmul %258, %10, %cst_95 {dimension_numbers = #tpu.dot_dimension_numbers<[1], [0], [0], [1], [0, 0, 1, 1], [], []>} : vector<8x128xbf16>, vector<128x128xbf16>, vector<8x128xf32> -> vector<8x128xf32>
    %260 = vector.broadcast %11 : vector<1x128xf32> to vector<8x128xf32>
    %261 = arith.addf %259, %260 : vector<8x128xf32>
    %262 = arith.addf %222, %249 : vector<8x128xf32>
    %263 = arith.maximumf %84, %143 : vector<8x128xf32>
    %264 = arith.maximumf %263, %202 : vector<8x128xf32>
    %265 = arith.maximumf %264, %261 : vector<8x128xf32>
    %cst_96 = arith.constant 0.000000e+00 : f32
    %266 = vector.broadcast %cst_96 : f32 to vector<8x128xf32>
    %cst_97 = arith.constant 0.000000e+00 : f32
    %267 = vector.broadcast %cst_97 : f32 to vector<8x128xf32>
    %268 = arith.subf %84, %265 : vector<8x128xf32>
    %269 = math.exp %268 : vector<8x128xf32>
    %270 = arith.addf %266, %269 : vector<8x128xf32>
    %271 = arith.mulf %269, %85 : vector<8x128xf32>
    %272 = arith.addf %267, %271 : vector<8x128xf32>
    %273 = arith.subf %143, %265 : vector<8x128xf32>
    %274 = math.exp %273 : vector<8x128xf32>
    %275 = arith.addf %270, %274 : vector<8x128xf32>
    %276 = arith.mulf %274, %144 : vector<8x128xf32>
    %277 = arith.addf %272, %276 : vector<8x128xf32>
    %278 = arith.subf %202, %265 : vector<8x128xf32>
    %279 = math.exp %278 : vector<8x128xf32>
    %280 = arith.addf %275, %279 : vector<8x128xf32>
    %281 = arith.mulf %279, %203 : vector<8x128xf32>
    %282 = arith.addf %277, %281 : vector<8x128xf32>
    %283 = arith.subf %261, %265 : vector<8x128xf32>
    %284 = math.exp %283 : vector<8x128xf32>
    %285 = arith.addf %280, %284 : vector<8x128xf32>
    %286 = arith.mulf %284, %262 : vector<8x128xf32>
    %287 = arith.addf %282, %286 : vector<8x128xf32>
    %288 = tpu.reciprocal %285 {approx = true} : vector<8x128xf32> -> vector<8x128xf32>
    %289 = arith.mulf %287, %288 : vector<8x128xf32>
    %290 = arith.truncf %289 : vector<8x128xf32> to vector<8x128xbf16>
    %cst_98 = arith.constant dense<0.000000e+00> : vector<8x128xf32>
    %291 = tpu.matmul %290, %12, %cst_98 {dimension_numbers = #tpu.dot_dimension_numbers<[1], [0], [0], [1], [0, 0, 1, 1], [], []>} : vector<8x128xbf16>, vector<128x128xbf16>, vector<8x128xf32> -> vector<8x128xf32>
    %292 = vector.broadcast %13 : vector<1x128xf32> to vector<8x128xf32>
    %293 = arith.addf %291, %292 : vector<8x128xf32>
    %c0_99 = arith.constant 0 : index
    %c0_100 = arith.constant 0 : index
    %c0_101 = arith.constant 0 : index
    %294 = vector.load %arg20[%c0_99, %c0_100, %c0_101] : memref<1x8x128xf32, #tpu.memory_space<vmem>>, vector<1x8x128xf32>
    %295 = vector.shape_cast %294 : vector<1x8x128xf32> to vector<8x128xf32>
    %296 = vector.shape_cast %293 : vector<8x128xf32> to vector<1x8x128xf32>
    tpu.vector_store %arg20[%c0_99, %c0_100, %c0_101], %296 {strides = array<i32>} : memref<1x8x128xf32, #tpu.memory_space<vmem>>, vector<1x8x128xf32>,
    return
  }
  func.func @transform_0(%arg0: i32, %arg1: i32) -> (i32, i32, i32) {
    %c0_i32 = arith.constant 0 : i32
    %c0_i32_0 = arith.constant 0 : i32
    return %arg0, %arg1, %c0_i32 : i32, i32, i32
  }
  func.func @transform_1(%arg0: i32, %arg1: i32) -> (i32, i32, i32) {
    %c0_i32 = arith.constant 0 : i32
    %c0_i32_0 = arith.constant 0 : i32
    return %arg0, %arg1, %c0_i32 : i32, i32, i32
  }
  func.func @transform_2(%arg0: i32, %arg1: i32) -> (i32, i32, i32, i32) {
    %c0_i32 = arith.constant 0 : i32
    %c0_i32_0 = arith.constant 0 : i32
    %c0_i32_1 = arith.constant 0 : i32
    return %arg0, %c0_i32, %arg1, %c0_i32_0 : i32, i32, i32, i32
  }
  func.func @transform_3(%arg0: i32, %arg1: i32) -> (i32, i32, i32) {
    %c0_i32 = arith.constant 0 : i32
    %c0_i32_0 = arith.constant 0 : i32
    %c0_i32_1 = arith.constant 0 : i32
    return %arg0, %c0_i32, %c0_i32_0 : i32, i32, i32
  }
  func.func @transform_4(%arg0: i32, %arg1: i32) -> (i32, i32) {
    %c0_i32 = arith.constant 0 : i32
    %c0_i32_0 = arith.constant 0 : i32
    %c0_i32_1 = arith.constant 0 : i32
    return %c0_i32, %c0_i32_0 : i32, i32
  }
  func.func @transform_5(%arg0: i32, %arg1: i32) -> (i32, i32) {
    %c0_i32 = arith.constant 0 : i32
    %c0_i32_0 = arith.constant 0 : i32
    %c0_i32_1 = arith.constant 0 : i32
    return %c0_i32, %c0_i32_0 : i32, i32
  }
  func.func @transform_6(%arg0: i32, %arg1: i32) -> (i32, i32) {
    %c0_i32 = arith.constant 0 : i32
    %c0_i32_0 = arith.constant 0 : i32
    %c0_i32_1 = arith.constant 0 : i32
    return %c0_i32, %c0_i32_0 : i32, i32
  }
  func.func @transform_7(%arg0: i32, %arg1: i32) -> (i32, i32) {
    %c0_i32 = arith.constant 0 : i32
    %c0_i32_0 = arith.constant 0 : i32
    %c0_i32_1 = arith.constant 0 : i32
    return %c0_i32, %c0_i32_0 : i32, i32
  }
  func.func @transform_8(%arg0: i32, %arg1: i32) -> (i32, i32) {
    %c0_i32 = arith.constant 0 : i32
    %c0_i32_0 = arith.constant 0 : i32
    %c0_i32_1 = arith.constant 0 : i32
    return %c0_i32, %c0_i32_0 : i32, i32
  }
  func.func @transform_9(%arg0: i32, %arg1: i32) -> (i32, i32) {
    %c0_i32 = arith.constant 0 : i32
    %c0_i32_0 = arith.constant 0 : i32
    %c0_i32_1 = arith.constant 0 : i32
    return %c0_i32, %c0_i32_0 : i32, i32
  }
  func.func @transform_10(%arg0: i32, %arg1: i32) -> (i32, i32) {
    %c0_i32 = arith.constant 0 : i32
    %c0_i32_0 = arith.constant 0 : i32
    %c0_i32_1 = arith.constant 0 : i32
    return %c0_i32, %c0_i32_0 : i32, i32
  }
  func.func @transform_11(%arg0: i32, %arg1: i32) -> (i32, i32) {
    %c0_i32 = arith.constant 0 : i32
    %c0_i32_0 = arith.constant 0 : i32
    %c0_i32_1 = arith.constant 0 : i32
    return %c0_i32, %c0_i32_0 : i32, i32
  }
  func.func @transform_12(%arg0: i32, %arg1: i32) -> (i32, i32) {
    %c0_i32 = arith.constant 0 : i32
    %c0_i32_0 = arith.constant 0 : i32
    %c0_i32_1 = arith.constant 0 : i32
    return %c0_i32, %c0_i32_0 : i32, i32
  }
  func.func @transform_13(%arg0: i32, %arg1: i32) -> (i32, i32) {
    %c0_i32 = arith.constant 0 : i32
    %c0_i32_0 = arith.constant 0 : i32
    %c0_i32_1 = arith.constant 0 : i32
    return %c0_i32, %c0_i32_0 : i32, i32
  }
  func.func @transform_14(%arg0: i32, %arg1: i32) -> (i32, i32) {
    %c0_i32 = arith.constant 0 : i32
    %c0_i32_0 = arith.constant 0 : i32
    %c0_i32_1 = arith.constant 0 : i32
    return %c0_i32, %c0_i32_0 : i32, i32
  }
  func.func @transform_15(%arg0: i32, %arg1: i32) -> (i32, i32) {
    %c0_i32 = arith.constant 0 : i32
    %c0_i32_0 = arith.constant 0 : i32
    %c0_i32_1 = arith.constant 0 : i32
    return %c0_i32, %c0_i32_0 : i32, i32
  }
  func.func @transform_16(%arg0: i32, %arg1: i32) -> (i32, i32) {
    %c0_i32 = arith.constant 0 : i32
    %c0_i32_0 = arith.constant 0 : i32
    %c0_i32_1 = arith.constant 0 : i32
    return %c0_i32, %c0_i32_0 : i32, i32
  }
  func.func @transform_17(%arg0: i32, %arg1: i32) -> (i32, i32) {
    %c0_i32 = arith.constant 0 : i32
    %c0_i32_0 = arith.constant 0 : i32
    %c0_i32_1 = arith.constant 0 : i32
    return %c0_i32, %c0_i32_0 : i32, i32
  }
  func.func @transform_18(%arg0: i32, %arg1: i32) -> (i32, i32, i32) {
    %c0_i32 = arith.constant 0 : i32
    %c0_i32_0 = arith.constant 0 : i32
    return %arg0, %arg1, %c0_i32 : i32, i32, i32
  }
}

</mosaic_0001>

<llo_original>
// kernel: vtransformer_forward.2
$region0: #{vtransformer_forward.2}
  #allocation0 [shape = 'u32[]', space=smem, size = 0x4, offset = 0x4, fixed_abs, tag = 'smem constant byte address 0x4 - core index']
  #allocation1 [shape = 'u32[72,128]{1,0:T(1,128)}', space=vmem, size = 0x9000, scoped, tag = 'internal scratch']
  %s0 = inlined_call_operand.vmem [shape: f32[2,16,8], index: 0, kind: input, shape index: {}]
  %s1 = inlined_call_operand.vmem [shape: bf16[8,128], index: 1, kind: input, shape index: {}]
  %s2 = inlined_call_operand.vmem [shape: f32[1,128], index: 2, kind: input, shape index: {}]
  %s3 = inlined_call_operand.vmem [shape: bf16[128,256], index: 3, kind: input, shape index: {}]
  %s4 = inlined_call_operand.vmem [shape: f32[1,256], index: 4, kind: input, shape index: {}]
  %s5 = inlined_call_operand.vmem [shape: bf16[2,16,256], index: 5, kind: output, shape index: {}]
  %s6 = sld [smem:[#allocation0]]
  $region53: #{vtransformer_forward.2} parent=0
    _
  %s8 = ssub.s32 1, %s6
  %s9 = scalar_select 0, %s8, %s6
  loop: start=0, step=1, limit=6
  $region2: #{vtransformer_forward.2} parent=0 // loop_pre_header
    _
  $region3: #{vtransformer_forward.2} parent=0 // loop_header
    %s11 = sphi 0, %s15
    %p12 = scmp.ge.s32.totalorder %s11, 6
    %s18 = sphi 0, %s30
    %s19 = sphi 0, %s26
    %s20 = sphi 0, %s18
    %s21 = sphi 0, %s19
    %s22 = sphi 0, %s20
    %s23 = sphi 0, %s21
    %s35 = sphi 0, %s37
    %s38 = sphi 0, %s35
    %s39 = sphi 0, %s38
    %s55 = sphi 0, %s39
    %s59 = sphi 0, %s59
    %s61 = sphi 0, %s59
    %s62 = sphi 0, %s61
    %s76 = sphi 0, %s62
    %s80 = sphi 0, %s80
    %s82 = sphi 0, %s80
    %s83 = sphi 0, %s82
    %s97 = sphi 0, %s83
    %s101 = sphi 0, %s101
    %s103 = sphi 0, %s101
    %s104 = sphi 0, %s103
    %s118 = sphi 0, %s104
    %s122 = sphi 0, %s122
    %s124 = sphi 0, %s122
    %s125 = sphi 0, %s124
    %s139 = sphi 0, %s125
    %s147 = sphi 0, %s149
    %s150 = sphi 0, %s147
    %s151 = sphi 0, %s150
    %s167 = sphi 0, %s151
  $region4: #{vtransformer_forward.2} parent=0 // loop_header_branch
    %14 = sbr.rel (%p12) target = $region8
  $region5: #{vtransformer_forward.2} parent=0 // loop_body
    %s16 = ssub.s32 %s11, 1
    %s17 = ssub.s32 %s11, 2
    %s24 = sadd.s32 1, %s19
    %p25 = scmp.ge.s32.totalorder %s24, 2
    %s26 = scalar_select %p25, 0, %s24
    %s27 = sadd.s32 1, %s18
    %s28 = scalar_select %p25, %s27, %s18
    %p29 = scmp.ge.s32.totalorder %s28, 2
    %s30 = scalar_select %p29, 0, %s28
    %s31 = ssub.s32 %s18, %s30
    %s32 = ssub.s32 %s19, %s26
    %s33 = sor.u32 %s31, %s32
    %p34 = scmp.eq.s32.totalorder %s33, 0
    %s36 = sadd.s32 %s35, 1
    %s37 = scalar_select %p34, %s35, %s36
    %p40 = pneg %p34
    %p41 = scmp.eq.s32.totalorder %s11, 3
    %p42 = por %p40, %p41
    %p43 = scmp.ne.s32.totalorder %s35, %s38
    %p44 = scmp.eq.s32.totalorder %s11, 0
    %p45 = por %p43, %p44
    %p46 = scmp.ne.s32.totalorder %s35, %s38
    %p47 = scmp.eq.s32.totalorder %s16, 3
    %p48 = por %p46, %p47
    %p49 = scmp.ne.s32.totalorder %s38, %s39
    %p50 = scmp.eq.s32.totalorder %s16, 0
    %p51 = por %p49, %p50
    %p52 = scmp.ne.s32.totalorder %s38, %s39
    %p53 = scmp.eq.s32.totalorder %s17, 3
    %p54 = por %p52, %p53
    %p56 = scmp.ne.s32.totalorder %s39, %s55
    %p57 = scmp.eq.s32.totalorder %s17, 0
    %p58 = por %p56, %p57
    %s60 = sadd.s32 %s59, 1
    %p63 = scmp.eq.s32.totalorder %s11, 3
    %p64 = scmp.ne.s32.totalorder %s59, %s61
    %p65 = scmp.eq.s32.totalorder %s11, 0
    %p66 = por %p64, %p65
    %p67 = scmp.ne.s32.totalorder %s59, %s61
    %p68 = scmp.eq.s32.totalorder %s16, 3
    %p69 = por %p67, %p68
    %p70 = scmp.ne.s32.totalorder %s61, %s62
    %p71 = scmp.eq.s32.totalorder %s16, 0
    %p72 = por %p70, %p71
    %p73 = scmp.ne.s32.totalorder %s61, %s62
    %p74 = scmp.eq.s32.totalorder %s17, 3
    %p75 = por %p73, %p74
    %p77 = scmp.ne.s32.totalorder %s62, %s76
    %p78 = scmp.eq.s32.totalorder %s17, 0
    %p79 = por %p77, %p78
    %s81 = sadd.s32 %s80, 1
    %p84 = scmp.eq.s32.totalorder %s11, 3
    %p85 = scmp.ne.s32.totalorder %s80, %s82
    %p86 = scmp.eq.s32.totalorder %s11, 0
    %p87 = por %p85, %p86
    %p88 = scmp.ne.s32.totalorder %s80, %s82
    %p89 = scmp.eq.s32.totalorder %s16, 3
    %p90 = por %p88, %p89
    %p91 = scmp.ne.s32.totalorder %s82, %s83
    %p92 = scmp.eq.s32.totalorder %s16, 0
    %p93 = por %p91, %p92
    %p94 = scmp.ne.s32.totalorder %s82, %s83
    %p95 = scmp.eq.s32.totalorder %s17, 3
    %p96 = por %p94, %p95
    %p98 = scmp.ne.s32.totalorder %s83, %s97
    %p99 = scmp.eq.s32.totalorder %s17, 0
    %p100 = por %p98, %p99
    %s102 = sadd.s32 %s101, 1
    %p105 = scmp.eq.s32.totalorder %s11, 3
    %p106 = scmp.ne.s32.totalorder %s101, %s103
    %p107 = scmp.eq.s32.totalorder %s11, 0
    %p108 = por %p106, %p107
    %p109 = scmp.ne.s32.totalorder %s101, %s103
    %p110 = scmp.eq.s32.totalorder %s16, 3
    %p111 = por %p109, %p110
    %p112 = scmp.ne.s32.totalorder %s103, %s104
    %p113 = scmp.eq.s32.totalorder %s16, 0
    %p114 = por %p112, %p113
    %p115 = scmp.ne.s32.totalorder %s103, %s104
    %p116 = scmp.eq.s32.totalorder %s17, 3
    %p117 = por %p115, %p116
    %p119 = scmp.ne.s32.totalorder %s104, %s118
    %p120 = scmp.eq.s32.totalorder %s17, 0
    %p121 = por %p119, %p120
    %s123 = sadd.s32 %s122, 1
    %p126 = scmp.eq.s32.totalorder %s11, 3
    %p127 = scmp.ne.s32.totalorder %s122, %s124
    %p128 = scmp.eq.s32.totalorder %s11, 0
    %p129 = por %p127, %p128
    %p130 = scmp.ne.s32.totalorder %s122, %s124
    %p131 = scmp.eq.s32.totalorder %s16, 3
    %p132 = por %p130, %p131
    %p133 = scmp.ne.s32.totalorder %s124, %s125
    %p134 = scmp.eq.s32.totalorder %s16, 0
    %p135 = por %p133, %p134
    %p136 = scmp.ne.s32.totalorder %s124, %s125
    %p137 = scmp.eq.s32.totalorder %s17, 3
    %p138 = por %p136, %p137
    %p140 = scmp.ne.s32.totalorder %s125, %s139
    %p141 = scmp.eq.s32.totalorder %s17, 0
    %p142 = por %p140, %p141
    %s143 = ssub.s32 %s18, %s30
    %s144 = ssub.s32 %s19, %s26
    %s145 = sor.u32 %s143, %s144
    %p146 = scmp.eq.s32.totalorder %s145, 0
    %s148 = sadd.s32 %s147, 1
    %s149 = scalar_select %p146, %s147, %s148
    %p152 = pneg %p146
    %p153 = scmp.eq.s32.totalorder %s11, 3
    %p154 = por %p152, %p153
    %p155 = scmp.ne.s32.totalorder %s147, %s150
    %p156 = scmp.eq.s32.totalorder %s11, 0
    %p157 = por %p155, %p156
    %p158 = scmp.ne.s32.totalorder %s147, %s150
    %p159 = scmp.eq.s32.totalorder %s16, 3
    %p160 = por %p158, %p159
    %p161 = scmp.ne.s32.totalorder %s150, %s151
    %p162 = scmp.eq.s32.totalorder %s16, 0
    %p163 = por %p161, %p162
    %p164 = scmp.ne.s32.totalorder %s150, %s151
    %p165 = scmp.eq.s32.totalorder %s17, 3
    %p166 = por %p164, %p165
    %p168 = scmp.ne.s32.totalorder %s151, %s167
    %p169 = scmp.eq.s32.totalorder %s17, 0
    %p170 = por %p168, %p169
    %p171 = scmp.le.s32.totalorder 1, %s11
    %p172 = scmp.lt.s32.totalorder %s11, 5
    %p173 = pnand %p171, %p172
    %p174 = pneg %p173
    // Predicated region
    $region9: #{vtransformer_forward.2} parent=5 // pred_check
      _
    $region10: #{vtransformer_forward.2} parent=5 // pred_check_branch
      %176 = sbr.rel (%p173) target = $region12
    $region11: #{vtransformer_forward.2} parent=5 // pred_region
      %s177 = ssub.s32 %s11, 1
      // Predicated region
      $region13: #{vtransformer_forward.2} parent=11 // pred_check
        %p178 = pneg %p72
      $region14: #{vtransformer_forward.2} parent=11 // pred_check_branch
        %180 = sbr.rel (%p178) target = $region16
      $region15: #{vtransformer_forward.2} parent=11 // pred_region
        _
      $region16: #{vtransformer_forward.2} parent=11 // pred_fallthru
        _
      // Predicated region
      $region17: #{vtransformer_forward.2} parent=11 // pred_check
        %p181 = pneg %p93
      $region18: #{vtransformer_forward.2} parent=11 // pred_check_branch
        %183 = sbr.rel (%p181) target = $region20
      $region19: #{vtransformer_forward.2} parent=11 // pred_region
        _
      $region20: #{vtransformer_forward.2} parent=11 // pred_fallthru
        _
      // Predicated region
      $region21: #{vtransformer_forward.2} parent=11 // pred_check
        %p184 = pneg %p114
      $region22: #{vtransformer_forward.2} parent=11 // pred_check_branch
        %186 = sbr.rel (%p184) target = $region24
      $region23: #{vtransformer_forward.2} parent=11 // pred_region
        _
      $region24: #{vtransformer_forward.2} parent=11 // pred_fallthru
        _
      // Predicated region
      $region25: #{vtransformer_forward.2} parent=11 // pred_check
        %p187 = pneg %p135
      $region26: #{vtransformer_forward.2} parent=11 // pred_check_branch
        %189 = sbr.rel (%p187) target = $region28
      $region27: #{vtransformer_forward.2} parent=11 // pred_region
        _
      $region28: #{vtransformer_forward.2} parent=11 // pred_fallthru
        _
    $region12: #{vtransformer_forward.2} parent=5 // pred_fallthru
      _
    %p190 = scmp.lt.s32.totalorder %s11, 4
    // Predicated region
    $region29: #{vtransformer_forward.2} parent=5 // pred_check
      %p191 = pneg %p190
    $region30: #{vtransformer_forward.2} parent=5 // pred_check_branch
      %193 = sbr.rel (%p191) target = $region32
    $region31: #{vtransformer_forward.2} parent=5 // pred_region
      // Predicated region
      $region33: #{vtransformer_forward.2} parent=31 // pred_check
        %p194 = pneg %p45
      $region34: #{vtransformer_forward.2} parent=31 // pred_check_branch
        %196 = sbr.rel (%p194) target = $region36
      $region35: #{vtransformer_forward.2} parent=31 // pred_region
        %p197 = scmp.lt.s32.totalorder %s18, 1
        %s198 = scalar_select %p197, %s18, 1
        %p199 = scmp.lt.s32.totalorder %s19, 1
        %s200 = scalar_select %p199, %s19, 1
        %s201 = smul.addr %s198, 2
        %s202 = sadd.s32 %s200, %s201
        %s203 = smul.addr %s202, 8
        %s204 = scalar_lea.vmem %s0, %s203
      $region36: #{vtransformer_forward.2} parent=31 // pred_fallthru
        _
    $region32: #{vtransformer_forward.2} parent=5 // pred_fallthru
      _
    %p205 = scmp.le.s32.totalorder 1, %s11
    %p206 = scmp.lt.s32.totalorder %s11, 5
    %p207 = pnand %p205, %p206
    %p208 = pneg %p207
    // Predicated region
    $region37: #{vtransformer_forward.2} parent=5 // pred_check
      _
    $region38: #{vtransformer_forward.2} parent=5 // pred_check_branch
      %210 = sbr.rel (%p207) target = $region40
    $region39: #{vtransformer_forward.2} parent=5 // pred_region
      %s211 = ssub.s32 %s11, 1
      %p212 = scmp.lt.s32.totalorder %s20, 1
      %s213 = scalar_select %p212, %s20, 1
      %p214 = scmp.lt.s32.totalorder %s21, 1
      %s215 = scalar_select %p214, %s21, 1
      %s216 = smul.addr %s213, 2
      %s217 = sadd.s32 %s215, %s216
      %s218 = smul.addr %s217, 8
      %s219 = scalar_lea.vmem %s0, %s218
      %p220 = pneg %p51
      %p221 = pneg %p48
      %p222 = pneg %p72
      %p223 = pneg %p69
      %p224 = pneg %p93
      %p225 = pneg %p90
      %p226 = pneg %p114
      %p227 = pneg %p111
      %p228 = pneg %p135
      %p229 = pneg %p132
      %p230 = pneg %p163
      %p231 = pneg %p160
      %p232 = scmp.lt.s32.totalorder %s20, 1
      %s233 = scalar_select %p232, %s20, 1
      %p234 = scmp.lt.s32.totalorder %s21, 1
      %s235 = scalar_select %p234, %s21, 1
      %s236 = smul.addr %s235, 2
      %s237 = smul.addr %s233, 4
      %s238 = sadd.s32 %s236, %s237
      %s239 = smul.addr %s238, 4
      %s240 = scalar_lea.vmem %s5, %s239
      %p241 = scmp.lt.s32.totalorder %s20, 1
      %s242 = scalar_select %p241, %s20, 1
      %p243 = scmp.lt.s32.totalorder %s21, 1
      %s244 = scalar_select %p243, %s21, 1
      %s245 = smul.addr %s242, 2
      %s246 = sadd.s32 %s244, %s245
      %s247 = smul.addr %s246, 8
      %s248 = scalar_lea.vmem %s0, %s247
      %p249 = scmp.lt.s32.totalorder %s20, 1
      %s250 = scalar_select %p249, %s20, 1
      %p251 = scmp.lt.s32.totalorder %s21, 1
      %s252 = scalar_select %p251, %s21, 1
      %s253 = smul.addr %s252, 2
      %s254 = smul.addr %s250, 4
      %s255 = sadd.s32 %s253, %s254
      %s256 = smul.addr %s255, 4
      %s257 = scalar_lea.vmem %s5, %s256
      %v259 = vld [vmem:[%s248] sm:$0xff]
      %v260 = vld [vmem:[%s1] sm:$0xf]
      %v261 = vpack.c.bf16 %v259, %v259
      %v262 = vld [vmem:[%s2] sm:$0x1]
      %v264 = vperm.slane %v262, 0
      %vm266 = vcmask 64512
      %v268 = vsel %vm266, %v261, 0
      %vm270 = vcmask 1043456
      %v272 = vsel %vm270, %v260, 0
      %274 = vmatpush.bf16.msra.mxu0 0
      %275 = vmatpush.bf16.msra.mxu0 0
      %276 = vmatpush.bf16.msra.mxu0 0
      %277 = vmatpush.bf16.msra.mxu0 0
      %278 = vmatpush.bf16.msra.mxu0 0
      %279 = vmatpush.bf16.msra.mxu0 0
      %280 = vmatpush.bf16.msra.mxu0 0
      %281 = vmatpush.bf16.msra.mxu0 %v272
      %282 = vmatmul.bf16.gmra.mxu0 %v268
      %v283 = vpop.f32.mrf.mxu0
      %v284 = vadd.f32 %v264, %v283
      %v285 = vpop.f32.mrf.mxu0
      %286 = vdwg.mxu0
      %v287 = vld [vmem:[%s3] sm:$0xff]
      %v288 = vld [vmem:[%s3 + $0x8] sm:$0xff]
      %v289 = vld [vmem:[%s3 + $0x10] sm:$0xff]
      %v290 = vld [vmem:[%s3 + $0x18] sm:$0xff]
      %v291 = vld [vmem:[%s3 + $0x20] sm:$0xff]
      %v292 = vld [vmem:[%s3 + $0x28] sm:$0xff]
      %v293 = vld [vmem:[%s3 + $0x30] sm:$0xff]
      %v294 = vld [vmem:[%s3 + $0x38] sm:$0xff]
      %v295 = vld [vmem:[%s3 + $0x40] sm:$0xff]
      %v296 = vld [vmem:[%s3 + $0x48] sm:$0xff]
      %v297 = vld [vmem:[%s3 + $0x50] sm:$0xff]
      %v298 = vld [vmem:[%s3 + $0x58] sm:$0xff]
      %v299 = vld [vmem:[%s3 + $0x60] sm:$0xff]
      %v300 = vld [vmem:[%s3 + $0x68] sm:$0xff]
      %v301 = vld [vmem:[%s3 + $0x70] sm:$0xff]
      %v302 = vld [vmem:[%s3 + $0x78] sm:$0xff]
      %v303 = vpack.c.bf16 %v284, %v284
      %v304 = vld [vmem:[%s4] sm:$0x3]
      %v306 = vperm.slane %v304, 0
      %v307 = vperm.slane %v304, 1
      %v326 = vunpack.c.l.b16 %v287
      %v327 = vunpack.c.h.b16 %v287
      %v328 = vunpack.c.l.b16 %v288
      %v329 = vunpack.c.h.b16 %v288
      %v330 = vunpack.c.l.b16 %v289
      %v331 = vunpack.c.h.b16 %v289
      %v332 = vunpack.c.l.b16 %v290
      %v333 = vunpack.c.h.b16 %v290
      %v334 = vunpack.c.l.b16 %v291
      %v335 = vunpack.c.h.b16 %v291
      %v336 = vunpack.c.l.b16 %v292
      %v337 = vunpack.c.h.b16 %v292
      %v338 = vunpack.c.l.b16 %v293
      %v339 = vunpack.c.h.b16 %v293
      %v340 = vunpack.c.l.b16 %v294
      %v341 = vunpack.c.h.b16 %v294
      %v342 = vunpack.c.l.b16 %v295
      %v343 = vunpack.c.h.b16 %v295
      %v344 = vunpack.c.l.b16 %v296
      %v345 = vunpack.c.h.b16 %v296
      %v346 = vunpack.c.l.b16 %v297
      %v347 = vunpack.c.h.b16 %v297
      %v348 = vunpack.c.l.b16 %v298
      %v349 = vunpack.c.h.b16 %v298
      %v350 = vunpack.c.l.b16 %v299
      %v351 = vunpack.c.h.b16 %v299
      %v352 = vunpack.c.l.b16 %v300
      %v353 = vunpack.c.h.b16 %v300
      %v354 = vunpack.c.l.b16 %v301
      %v355 = vunpack.c.h.b16 %v301
      %v356 = vunpack.c.l.b16 %v302
      %v357 = vunpack.c.h.b16 %v302
      %v358 = vpack.c.b16 %v328, %v326
      %v359 = vpack.c.b16 %v329, %v327
      %v360 = vpack.c.b16 %v332, %v330
      %v361 = vpack.c.b16 %v333, %v331
      %v362 = vpack.c.b16 %v336, %v334
      %v363 = vpack.c.b16 %v337, %v335
      %v364 = vpack.c.b16 %v340, %v338
      %v365 = vpack.c.b16 %v341, %v339
      %v366 = vpack.c.b16 %v344, %v342
      %v367 = vpack.c.b16 %v345, %v343
      %v368 = vpack.c.b16 %v348, %v346
      %v369 = vpack.c.b16 %v349, %v347
      %v370 = vpack.c.b16 %v352, %v350
      %v371 = vpack.c.b16 %v353, %v351
      %v372 = vpack.c.b16 %v356, %v354
      %v373 = vpack.c.b16 %v357, %v355
      %390 = vmatpush.bf16.msra.mxu0 %v372
      %391 = vmatpush.bf16.msra.mxu0 %v370
      %392 = vmatpush.bf16.msra.mxu0 %v368
      %393 = vmatpush.bf16.msra.mxu0 %v366
      %394 = vmatpush.bf16.msra.mxu0 %v364
      %395 = vmatpush.bf16.msra.mxu0 %v362
      %396 = vmatpush.bf16.msra.mxu0 %v360
      %397 = vmatpush.bf16.msra.mxu0 %v358
      %398 = vmatmul.bf16.gmra.mxu0 %v303
      %v399 = vpop.f32.mrf.mxu0
      %v400 = vadd.f32 %v306, %v399
      %v401 = vpop.f32.mrf.mxu0
      %402 = vdwg.mxu0
      %403 = vmatpush.bf16.msra.mxu0 %v373
      %404 = vmatpush.bf16.msra.mxu0 %v371
      %405 = vmatpush.bf16.msra.mxu0 %v369
      %406 = vmatpush.bf16.msra.mxu0 %v367
      %407 = vmatpush.bf16.msra.mxu0 %v365
      %408 = vmatpush.bf16.msra.mxu0 %v363
      %409 = vmatpush.bf16.msra.mxu0 %v361
      %410 = vmatpush.bf16.msra.mxu0 %v359
      %411 = vmatmul.bf16.gmra.mxu0 %v303
      %v412 = vpop.f32.mrf.mxu0
      %v413 = vadd.f32 %v307, %v412
      %v414 = vpop.f32.mrf.mxu0
      %415 = vdwg.mxu0
      %v416 = vpack.c.bf16 %v413, %v400
      %417 = vst [vmem:[%s257] sm:$0xff] %v416
      %p418 = scmp.lt.s32.totalorder %s20, 1
      %s419 = scalar_select %p418, %s20, 1
      %p420 = scmp.lt.s32.totalorder %s21, 1
      %s421 = scalar_select %p420, %s21, 1
      %s422 = smul.addr %s421, 2
      %s423 = smul.addr %s419, 4
      %s424 = sadd.s32 %s422, %s423
      %s425 = smul.addr %s424, 4
      %s426 = scalar_lea.vmem %s5, %s425
      // Predicated region
      $region41: #{vtransformer_forward.2} parent=39 // pred_check
        %p427 = pneg %p160
      $region42: #{vtransformer_forward.2} parent=39 // pred_check_branch
        %429 = sbr.rel (%p427) target = $region44
      $region43: #{vtransformer_forward.2} parent=39 // pred_region
        _
      $region44: #{vtransformer_forward.2} parent=39 // pred_fallthru
        _
    $region40: #{vtransformer_forward.2} parent=5 // pred_fallthru
      _
    %p430 = scmp.le.s32.totalorder 2, %s11
    // Predicated region
    $region45: #{vtransformer_forward.2} parent=5 // pred_check
      %p431 = pneg %p430
    $region46: #{vtransformer_forward.2} parent=5 // pred_check_branch
      %433 = sbr.rel (%p431) target = $region48
    $region47: #{vtransformer_forward.2} parent=5 // pred_region
      %s434 = ssub.s32 %s11, 2
      // Predicated region
      $region49: #{vtransformer_forward.2} parent=47 // pred_check
        %p435 = pneg %p166
      $region50: #{vtransformer_forward.2} parent=47 // pred_check_branch
        %437 = sbr.rel (%p435) target = $region52
      $region51: #{vtransformer_forward.2} parent=47 // pred_region
        %p438 = scmp.lt.s32.totalorder %s22, 1
        %s439 = scalar_select %p438, %s22, 1
        %p440 = scmp.lt.s32.totalorder %s23, 1
        %s441 = scalar_select %p440, %s23, 1
        %s442 = smul.addr %s441, 2
        %s443 = smul.addr %s439, 4
        %s444 = sadd.s32 %s442, %s443
        %s445 = smul.addr %s444, 4
        %s446 = scalar_lea.vmem %s5, %s445
      $region52: #{vtransformer_forward.2} parent=47 // pred_fallthru
        _
    $region48: #{vtransformer_forward.2} parent=5 // pred_fallthru
      _
  $region6: #{vtransformer_forward.2} parent=0 // loop_footer
    %s15 = sadd.s32 1, %s11
  $region7: #{vtransformer_forward.2} parent=0 // loop_footer_branch
    %10 = sbr.rel target = $region3
  $region8: #{vtransformer_forward.2} parent=0 // loop_exit
    _

// kernel: vtransformer_forward.3
$region0: #{vtransformer_forward.3}
  #allocation0 [shape = 'u32[]', space=smem, size = 0x4, offset = 0x4, fixed_abs, tag = 'smem constant byte address 0x4 - core index']
  #allocation1 [shape = 'u32[72,128]{1,0:T(1,128)}', space=vmem, size = 0x9000, scoped, tag = 'internal scratch']
  %s0 = inlined_call_operand.vmem [shape: f32[2,16,8], index: 0, kind: input, shape index: {}]
  %s1 = inlined_call_operand.vmem [shape: s32[2,16,4], index: 1, kind: input, shape index: {}]
  %s2 = inlined_call_operand.vmem [shape: f32[2,4,16,3], index: 2, kind: input, shape index: {}]
  %s3 = inlined_call_operand.vmem [shape: bf16[2,16,256], index: 3, kind: input, shape index: {}]
  %s4 = inlined_call_operand.vmem [shape: bf16[8,128], index: 4, kind: input, shape index: {}]
  %s5 = inlined_call_operand.vmem [shape: f32[1,128], index: 5, kind: input, shape index: {}]
  %s6 = inlined_call_operand.vmem [shape: bf16[128,128], index: 6, kind: input, shape index: {}]
  %s7 = inlined_call_operand.vmem [shape: f32[1,128], index: 7, kind: input, shape index: {}]
  %s8 = inlined_call_operand.vmem [shape: f32[3,128], index: 8, kind: input, shape index: {}]
  %s9 = inlined_call_operand.vmem [shape: f32[1,128], index: 9, kind: input, shape index: {}]
  %s10 = inlined_call_operand.vmem [shape: bf16[128,128], index: 10, kind: input, shape index: {}]
  %s11 = inlined_call_operand.vmem [shape: f32[1,128], index: 11, kind: input, shape index: {}]
  %s12 = inlined_call_operand.vmem [shape: bf16[128,128], index: 12, kind: input, shape index: {}]
  %s13 = inlined_call_operand.vmem [shape: f32[1,128], index: 13, kind: input, shape index: {}]
  %s14 = inlined_call_operand.vmem [shape: bf16[128,128], index: 14, kind: input, shape index: {}]
  %s15 = inlined_call_operand.vmem [shape: f32[1,128], index: 15, kind: input, shape index: {}]
  %s16 = inlined_call_operand.vmem [shape: bf16[128,128], index: 16, kind: input, shape index: {}]
  %s17 = inlined_call_operand.vmem [shape: f32[1,128], index: 17, kind: input, shape index: {}]
  %s18 = inlined_call_operand.vmem [shape: f32[2,16,128], index: 18, kind: output, shape index: {}]
  %s19 = sld [smem:[#allocation0]]
  $region143: #{vtransformer_forward.3} parent=0
    _
  %s21 = ssub.s32 1, %s19
  %s22 = scalar_select 0, %s21, %s19
  $region1: #{vtransformer_forward.3} parent=0
    #allocation2 [shape = 'u8[32768]{0}', space=vmem, size = 0x8000, scoped, tag = 'input window, operand 2']
    loop: start=0, step=1, limit=6
    $region2: #{vtransformer_forward.3} parent=1 // loop_pre_header
      _
    $region3: #{vtransformer_forward.3} parent=1 // loop_header
      %s24 = sphi 0, %s28
      %p25 = scmp.ge.s32.totalorder %s24, 6
      %s31 = sphi 0, %s43
      %s32 = sphi 0, %s39
      %s33 = sphi 0, %s31
      %s34 = sphi 0, %s32
      %s35 = sphi 0, %s33
      %s36 = sphi 0, %s34
      %s48 = sphi 0, %s50
      %s51 = sphi 0, %s48
      %s52 = sphi 0, %s51
      %s68 = sphi 0, %s52
      %s76 = sphi 0, %s78
      %s79 = sphi 0, %s76
      %s80 = sphi 0, %s79
      %s96 = sphi 0, %s80
      %s104 = sphi 0, %s106
      %s107 = sphi 0, %s104
      %s108 = sphi 0, %s107
      %s124 = sphi 0, %s108
      %s130 = sphi 0, %s132
      %s133 = sphi 0, %s130
      %s134 = sphi 0, %s133
      %s150 = sphi 0, %s134
      %s154 = sphi 0, %s154
      %s156 = sphi 0, %s154
      %s157 = sphi 0, %s156
      %s171 = sphi 0, %s157
      %s175 = sphi 0, %s175
      %s177 = sphi 0, %s175
      %s178 = sphi 0, %s177
      %s192 = sphi 0, %s178
      %s196 = sphi 0, %s196
      %s198 = sphi 0, %s196
      %s199 = sphi 0, %s198
      %s213 = sphi 0, %s199
      %s217 = sphi 0, %s217
      %s219 = sphi 0, %s217
      %s220 = sphi 0, %s219
      %s234 = sphi 0, %s220
      %s238 = sphi 0, %s238
      %s240 = sphi 0, %s238
      %s241 = sphi 0, %s240
      %s255 = sphi 0, %s241
      %s259 = sphi 0, %s259
      %s261 = sphi 0, %s259
      %s262 = sphi 0, %s261
      %s276 = sphi 0, %s262
      %s280 = sphi 0, %s280
      %s282 = sphi 0, %s280
      %s283 = sphi 0, %s282
      %s297 = sphi 0, %s283
      %s301 = sphi 0, %s301
      %s303 = sphi 0, %s301
      %s304 = sphi 0, %s303
      %s318 = sphi 0, %s304
      %s322 = sphi 0, %s322
      %s324 = sphi 0, %s322
      %s325 = sphi 0, %s324
      %s339 = sphi 0, %s325
      %s343 = sphi 0, %s343
      %s345 = sphi 0, %s343
      %s346 = sphi 0, %s345
      %s360 = sphi 0, %s346
      %s364 = sphi 0, %s364
      %s366 = sphi 0, %s364
      %s367 = sphi 0, %s366
      %s381 = sphi 0, %s367
      %s385 = sphi 0, %s385
      %s387 = sphi 0, %s385
      %s388 = sphi 0, %s387
      %s402 = sphi 0, %s388
      %s406 = sphi 0, %s406
      %s408 = sphi 0, %s406
      %s409 = sphi 0, %s408
      %s423 = sphi 0, %s409
      %s427 = sphi 0, %s427
      %s429 = sphi 0, %s427
      %s430 = sphi 0, %s429
      %s444 = sphi 0, %s430
      %s452 = sphi 0, %s454
      %s455 = sphi 0, %s452
      %s456 = sphi 0, %s455
      %s472 = sphi 0, %s456
    $region4: #{vtransformer_forward.3} parent=1 // loop_header_branch
      %27 = sbr.rel (%p25) target = $region8
    $region5: #{vtransformer_forward.3} parent=1 // loop_body
      %s29 = ssub.s32 %s24, 1
      %s30 = ssub.s32 %s24, 2
      %s37 = sadd.s32 1, %s32
      %p38 = scmp.ge.s32.totalorder %s37, 2
      %s39 = scalar_select %p38, 0, %s37
      %s40 = sadd.s32 1, %s31
      %s41 = scalar_select %p38, %s40, %s31
      %p42 = scmp.ge.s32.totalorder %s41, 2
      %s43 = scalar_select %p42, 0, %s41
      %s44 = ssub.s32 %s31, %s43
      %s45 = ssub.s32 %s32, %s39
      %s46 = sor.u32 %s44, %s45
      %p47 = scmp.eq.s32.totalorder %s46, 0
      %s49 = sadd.s32 %s48, 1
      %s50 = scalar_select %p47, %s48, %s49
      %p53 = pneg %p47
      %p54 = scmp.eq.s32.totalorder %s24, 3
      %p55 = por %p53, %p54
      %p56 = scmp.ne.s32.totalorder %s48, %s51
      %p57 = scmp.eq.s32.totalorder %s24, 0
      %p58 = por %p56, %p57
      %p59 = scmp.ne.s32.totalorder %s48, %s51
      %p60 = scmp.eq.s32.totalorder %s29, 3
      %p61 = por %p59, %p60
      %p62 = scmp.ne.s32.totalorder %s51, %s52
      %p63 = scmp.eq.s32.totalorder %s29, 0
      %p64 = por %p62, %p63
      %p65 = scmp.ne.s32.totalorder %s51, %s52
      %p66 = scmp.eq.s32.totalorder %s30, 3
      %p67 = por %p65, %p66
      %p69 = scmp.ne.s32.totalorder %s52, %s68
      %p70 = scmp.eq.s32.totalorder %s30, 0
      %p71 = por %p69, %p70
      %s72 = ssub.s32 %s31, %s43
      %s73 = ssub.s32 %s32, %s39
      %s74 = sor.u32 %s72, %s73
      %p75 = scmp.eq.s32.totalorder %s74, 0
      %s77 = sadd.s32 %s76, 1
      %s78 = scalar_select %p75, %s76, %s77
      %p81 = pneg %p75
      %p82 = scmp.eq.s32.totalorder %s24, 3
      %p83 = por %p81, %p82
      %p84 = scmp.ne.s32.totalorder %s76, %s79
      %p85 = scmp.eq.s32.totalorder %s24, 0
      %p86 = por %p84, %p85
      %p87 = scmp.ne.s32.totalorder %s76, %s79
      %p88 = scmp.eq.s32.totalorder %s29, 3
      %p89 = por %p87, %p88
      %p90 = scmp.ne.s32.totalorder %s79, %s80
      %p91 = scmp.eq.s32.totalorder %s29, 0
      %p92 = por %p90, %p91
      %p93 = scmp.ne.s32.totalorder %s79, %s80
      %p94 = scmp.eq.s32.totalorder %s30, 3
      %p95 = por %p93, %p94
      %p97 = scmp.ne.s32.totalorder %s80, %s96
      %p98 = scmp.eq.s32.totalorder %s30, 0
      %p99 = por %p97, %p98
      %s100 = ssub.s32 %s31, %s43
      %s101 = ssub.s32 %s32, %s39
      %s102 = sor.u32 %s100, %s101
      %p103 = scmp.eq.s32.totalorder %s102, 0
      %s105 = sadd.s32 %s104, 1
      %s106 = scalar_select %p103, %s104, %s105
      %p109 = pneg %p103
      %p110 = scmp.eq.s32.totalorder %s24, 3
      %p111 = por %p109, %p110
      %p112 = scmp.ne.s32.totalorder %s104, %s107
      %p113 = scmp.eq.s32.totalorder %s24, 0
      %p114 = por %p112, %p113
      %p115 = scmp.ne.s32.totalorder %s104, %s107
      %p116 = scmp.eq.s32.totalorder %s29, 3
      %p117 = por %p115, %p116
      %p118 = scmp.ne.s32.totalorder %s107, %s108
      %p119 = scmp.eq.s32.totalorder %s29, 0
      %p120 = por %p118, %p119
      %p121 = scmp.ne.s32.totalorder %s107, %s108
      %p122 = scmp.eq.s32.totalorder %s30, 3
      %p123 = por %p121, %p122
      %p125 = scmp.ne.s32.totalorder %s108, %s124
      %p126 = scmp.eq.s32.totalorder %s30, 0
      %p127 = por %p125, %p126
      %s128 = ssub.s32 %s31, %s43
      %p129 = scmp.eq.s32.totalorder %s128, 0
      %s131 = sadd.s32 %s130, 1
      %s132 = scalar_select %p129, %s130, %s131
      %p135 = pneg %p129
      %p136 = scmp.eq.s32.totalorder %s24, 3
      %p137 = por %p135, %p136
      %p138 = scmp.ne.s32.totalorder %s130, %s133
      %p139 = scmp.eq.s32.totalorder %s24, 0
      %p140 = por %p138, %p139
      %p141 = scmp.ne.s32.totalorder %s130, %s133
      %p142 = scmp.eq.s32.totalorder %s29, 3
      %p143 = por %p141, %p142
      %p144 = scmp.ne.s32.totalorder %s133, %s134
      %p145 = scmp.eq.s32.totalorder %s29, 0
      %p146 = por %p144, %p145
      %p147 = scmp.ne.s32.totalorder %s133, %s134
      %p148 = scmp.eq.s32.totalorder %s30, 3
      %p149 = por %p147, %p148
      %p151 = scmp.ne.s32.totalorder %s134, %s150
      %p152 = scmp.eq.s32.totalorder %s30, 0
      %p153 = por %p151, %p152
      %s155 = sadd.s32 %s154, 1
      %p158 = scmp.eq.s32.totalorder %s24, 3
      %p159 = scmp.ne.s32.totalorder %s154, %s156
      %p160 = scmp.eq.s32.totalorder %s24, 0
      %p161 = por %p159, %p160
      %p162 = scmp.ne.s32.totalorder %s154, %s156
      %p163 = scmp.eq.s32.totalorder %s29, 3
      %p164 = por %p162, %p163
      %p165 = scmp.ne.s32.totalorder %s156, %s157
      %p166 = scmp.eq.s32.totalorder %s29, 0
      %p167 = por %p165, %p166
      %p168 = scmp.ne.s32.totalorder %s156, %s157
      %p169 = scmp.eq.s32.totalorder %s30, 3
      %p170 = por %p168, %p169
      %p172 = scmp.ne.s32.totalorder %s157, %s171
      %p173 = scmp.eq.s32.totalorder %s30, 0
      %p174 = por %p172, %p173
      %s176 = sadd.s32 %s175, 1
      %p179 = scmp.eq.s32.totalorder %s24, 3
      %p180 = scmp.ne.s32.totalorder %s175, %s177
      %p181 = scmp.eq.s32.totalorder %s24, 0
      %p182 = por %p180, %p181
      %p183 = scmp.ne.s32.totalorder %s175, %s177
      %p184 = scmp.eq.s32.totalorder %s29, 3
      %p185 = por %p183, %p184
      %p186 = scmp.ne.s32.totalorder %s177, %s178
      %p187 = scmp.eq.s32.totalorder %s29, 0
      %p188 = por %p186, %p187
      %p189 = scmp.ne.s32.totalorder %s177, %s178
      %p190 = scmp.eq.s32.totalorder %s30, 3
      %p191 = por %p189, %p190
      %p193 = scmp.ne.s32.totalorder %s178, %s192
      %p194 = scmp.eq.s32.totalorder %s30, 0
      %p195 = por %p193, %p194
      %s197 = sadd.s32 %s196, 1
      %p200 = scmp.eq.s32.totalorder %s24, 3
      %p201 = scmp.ne.s32.totalorder %s196, %s198
      %p202 = scmp.eq.s32.totalorder %s24, 0
      %p203 = por %p201, %p202
      %p204 = scmp.ne.s32.totalorder %s196, %s198
      %p205 = scmp.eq.s32.totalorder %s29, 3
      %p206 = por %p204, %p205
      %p207 = scmp.ne.s32.totalorder %s198, %s199
      %p208 = scmp.eq.s32.totalorder %s29, 0
      %p209 = por %p207, %p208
      %p210 = scmp.ne.s32.totalorder %s198, %s199
      %p211 = scmp.eq.s32.totalorder %s30, 3
      %p212 = por %p210, %p211
      %p214 = scmp.ne.s32.totalorder %s199, %s213
      %p215 = scmp.eq.s32.totalorder %s30, 0
      %p216 = por %p214, %p215
      %s218 = sadd.s32 %s217, 1
      %p221 = scmp.eq.s32.totalorder %s24, 3
      %p222 = scmp.ne.s32.totalorder %s217, %s219
      %p223 = scmp.eq.s32.totalorder %s24, 0
      %p224 = por %p222, %p223
      %p225 = scmp.ne.s32.totalorder %s217, %s219
      %p226 = scmp.eq.s32.totalorder %s29, 3
      %p227 = por %p225, %p226
      %p228 = scmp.ne.s32.totalorder %s219, %s220
      %p229 = scmp.eq.s32.totalorder %s29, 0
      %p230 = por %p228, %p229
      %p231 = scmp.ne.s32.totalorder %s219, %s220
      %p232 = scmp.eq.s32.totalorder %s30, 3
      %p233 = por %p231, %p232
      %p235 = scmp.ne.s32.totalorder %s220, %s234
      %p236 = scmp.eq.s32.totalorder %s30, 0
      %p237 = por %p235, %p236
      %s239 = sadd.s32 %s238, 1
      %p242 = scmp.eq.s32.totalorder %s24, 3
      %p243 = scmp.ne.s32.totalorder %s238, %s240
      %p244 = scmp.eq.s32.totalorder %s24, 0
      %p245 = por %p243, %p244
      %p246 = scmp.ne.s32.totalorder %s238, %s240
      %p247 = scmp.eq.s32.totalorder %s29, 3
      %p248 = por %p246, %p247
      %p249 = scmp.ne.s32.totalorder %s240, %s241
      %p250 = scmp.eq.s32.totalorder %s29, 0
      %p251 = por %p249, %p250
      %p252 = scmp.ne.s32.totalorder %s240, %s241
      %p253 = scmp.eq.s32.totalorder %s30, 3
      %p254 = por %p252, %p253
      %p256 = scmp.ne.s32.totalorder %s241, %s255
      %p257 = scmp.eq.s32.totalorder %s30, 0
      %p258 = por %p256, %p257
      %s260 = sadd.s32 %s259, 1
      %p263 = scmp.eq.s32.totalorder %s24, 3
      %p264 = scmp.ne.s32.totalorder %s259, %s261
      %p265 = scmp.eq.s32.totalorder %s24, 0
      %p266 = por %p264, %p265
      %p267 = scmp.ne.s32.totalorder %s259, %s261
      %p268 = scmp.eq.s32.totalorder %s29, 3
      %p269 = por %p267, %p268
      %p270 = scmp.ne.s32.totalorder %s261, %s262
      %p271 = scmp.eq.s32.totalorder %s29, 0
      %p272 = por %p270, %p271
      %p273 = scmp.ne.s32.totalorder %s261, %s262
      %p274 = scmp.eq.s32.totalorder %s30, 3
      %p275 = por %p273, %p274
      %p277 = scmp.ne.s32.totalorder %s262, %s276
      %p278 = scmp.eq.s32.totalorder %s30, 0
      %p279 = por %p277, %p278
      %s281 = sadd.s32 %s280, 1
      %p284 = scmp.eq.s32.totalorder %s24, 3
      %p285 = scmp.ne.s32.totalorder %s280, %s282
      %p286 = scmp.eq.s32.totalorder %s24, 0
      %p287 = por %p285, %p286
      %p288 = scmp.ne.s32.totalorder %s280, %s282
      %p289 = scmp.eq.s32.totalorder %s29, 3
      %p290 = por %p288, %p289
      %p291 = scmp.ne.s32.totalorder %s282, %s283
      %p292 = scmp.eq.s32.totalorder %s29, 0
      %p293 = por %p291, %p292
      %p294 = scmp.ne.s32.totalorder %s282, %s283
      %p295 = scmp.eq.s32.totalorder %s30, 3
      %p296 = por %p294, %p295
      %p298 = scmp.ne.s32.totalorder %s283, %s297
      %p299 = scmp.eq.s32.totalorder %s30, 0
      %p300 = por %p298, %p299
      %s302 = sadd.s32 %s301, 1
      %p305 = scmp.eq.s32.totalorder %s24, 3
      %p306 = scmp.ne.s32.totalorder %s301, %s303
      %p307 = scmp.eq.s32.totalorder %s24, 0
      %p308 = por %p306, %p307
      %p309 = scmp.ne.s32.totalorder %s301, %s303
      %p310 = scmp.eq.s32.totalorder %s29, 3
      %p311 = por %p309, %p310
      %p312 = scmp.ne.s32.totalorder %s303, %s304
      %p313 = scmp.eq.s32.totalorder %s29, 0
      %p314 = por %p312, %p313
      %p315 = scmp.ne.s32.totalorder %s303, %s304
      %p316 = scmp.eq.s32.totalorder %s30, 3
      %p317 = por %p315, %p316
      %p319 = scmp.ne.s32.totalorder %s304, %s318
      %p320 = scmp.eq.s32.totalorder %s30, 0
      %p321 = por %p319, %p320
      %s323 = sadd.s32 %s322, 1
      %p326 = scmp.eq.s32.totalorder %s24, 3
      %p327 = scmp.ne.s32.totalorder %s322, %s324
      %p328 = scmp.eq.s32.totalorder %s24, 0
      %p329 = por %p327, %p328
      %p330 = scmp.ne.s32.totalorder %s322, %s324
      %p331 = scmp.eq.s32.totalorder %s29, 3
      %p332 = por %p330, %p331
      %p333 = scmp.ne.s32.totalorder %s324, %s325
      %p334 = scmp.eq.s32.totalorder %s29, 0
      %p335 = por %p333, %p334
      %p336 = scmp.ne.s32.totalorder %s324, %s325
      %p337 = scmp.eq.s32.totalorder %s30, 3
      %p338 = por %p336, %p337
      %p340 = scmp.ne.s32.totalorder %s325, %s339
      %p341 = scmp.eq.s32.totalorder %s30, 0
      %p342 = por %p340, %p341
      %s344 = sadd.s32 %s343, 1
      %p347 = scmp.eq.s32.totalorder %s24, 3
      %p348 = scmp.ne.s32.totalorder %s343, %s345
      %p349 = scmp.eq.s32.totalorder %s24, 0
      %p350 = por %p348, %p349
      %p351 = scmp.ne.s32.totalorder %s343, %s345
      %p352 = scmp.eq.s32.totalorder %s29, 3
      %p353 = por %p351, %p352
      %p354 = scmp.ne.s32.totalorder %s345, %s346
      %p355 = scmp.eq.s32.totalorder %s29, 0
      %p356 = por %p354, %p355
      %p357 = scmp.ne.s32.totalorder %s345, %s346
      %p358 = scmp.eq.s32.totalorder %s30, 3
      %p359 = por %p357, %p358
      %p361 = scmp.ne.s32.totalorder %s346, %s360
      %p362 = scmp.eq.s32.totalorder %s30, 0
      %p363 = por %p361, %p362
      %s365 = sadd.s32 %s364, 1
      %p368 = scmp.eq.s32.totalorder %s24, 3
      %p369 = scmp.ne.s32.totalorder %s364, %s366
      %p370 = scmp.eq.s32.totalorder %s24, 0
      %p371 = por %p369, %p370
      %p372 = scmp.ne.s32.totalorder %s364, %s366
      %p373 = scmp.eq.s32.totalorder %s29, 3
      %p374 = por %p372, %p373
      %p375 = scmp.ne.s32.totalorder %s366, %s367
      %p376 = scmp.eq.s32.totalorder %s29, 0
      %p377 = por %p375, %p376
      %p378 = scmp.ne.s32.totalorder %s366, %s367
      %p379 = scmp.eq.s32.totalorder %s30, 3
      %p380 = por %p378, %p379
      %p382 = scmp.ne.s32.totalorder %s367, %s381
      %p383 = scmp.eq.s32.totalorder %s30, 0
      %p384 = por %p382, %p383
      %s386 = sadd.s32 %s385, 1
      %p389 = scmp.eq.s32.totalorder %s24, 3
      %p390 = scmp.ne.s32.totalorder %s385, %s387
      %p391 = scmp.eq.s32.totalorder %s24, 0
      %p392 = por %p390, %p391
      %p393 = scmp.ne.s32.totalorder %s385, %s387
      %p394 = scmp.eq.s32.totalorder %s29, 3
      %p395 = por %p393, %p394
      %p396 = scmp.ne.s32.totalorder %s387, %s388
      %p397 = scmp.eq.s32.totalorder %s29, 0
      %p398 = por %p396, %p397
      %p399 = scmp.ne.s32.totalorder %s387, %s388
      %p400 = scmp.eq.s32.totalorder %s30, 3
      %p401 = por %p399, %p400
      %p403 = scmp.ne.s32.totalorder %s388, %s402
      %p404 = scmp.eq.s32.totalorder %s30, 0
      %p405 = por %p403, %p404
      %s407 = sadd.s32 %s406, 1
      %p410 = scmp.eq.s32.totalorder %s24, 3
      %p411 = scmp.ne.s32.totalorder %s406, %s408
      %p412 = scmp.eq.s32.totalorder %s24, 0
      %p413 = por %p411, %p412
      %p414 = scmp.ne.s32.totalorder %s406, %s408
      %p415 = scmp.eq.s32.totalorder %s29, 3
      %p416 = por %p414, %p415
      %p417 = scmp.ne.s32.totalorder %s408, %s409
      %p418 = scmp.eq.s32.totalorder %s29, 0
      %p419 = por %p417, %p418
      %p420 = scmp.ne.s32.totalorder %s408, %s409
      %p421 = scmp.eq.s32.totalorder %s30, 3
      %p422 = por %p420, %p421
      %p424 = scmp.ne.s32.totalorder %s409, %s423
      %p425 = scmp.eq.s32.totalorder %s30, 0
      %p426 = por %p424, %p425
      %s428 = sadd.s32 %s427, 1
      %p431 = scmp.eq.s32.totalorder %s24, 3
      %p432 = scmp.ne.s32.totalorder %s427, %s429
      %p433 = scmp.eq.s32.totalorder %s24, 0
      %p434 = por %p432, %p433
      %p435 = scmp.ne.s32.totalorder %s427, %s429
      %p436 = scmp.eq.s32.totalorder %s29, 3
      %p437 = por %p435, %p436
      %p438 = scmp.ne.s32.totalorder %s429, %s430
      %p439 = scmp.eq.s32.totalorder %s29, 0
      %p440 = por %p438, %p439
      %p441 = scmp.ne.s32.totalorder %s429, %s430
      %p442 = scmp.eq.s32.totalorder %s30, 3
      %p443 = por %p441, %p442
      %p445 = scmp.ne.s32.totalorder %s430, %s444
      %p446 = scmp.eq.s32.totalorder %s30, 0
      %p447 = por %p445, %p446
      %s448 = ssub.s32 %s31, %s43
      %s449 = ssub.s32 %s32, %s39
      %s450 = sor.u32 %s448, %s449
      %p451 = scmp.eq.s32.totalorder %s450, 0
      %s453 = sadd.s32 %s452, 1
      %s454 = scalar_select %p451, %s452, %s453
      %p457 = pneg %p451
      %p458 = scmp.eq.s32.totalorder %s24, 3
      %p459 = por %p457, %p458
      %p460 = scmp.ne.s32.totalorder %s452, %s455
      %p461 = scmp.eq.s32.totalorder %s24, 0
      %p462 = por %p460, %p461
      %p463 = scmp.ne.s32.totalorder %s452, %s455
      %p464 = scmp.eq.s32.totalorder %s29, 3
      %p465 = por %p463, %p464
      %p466 = scmp.ne.s32.totalorder %s455, %s456
      %p467 = scmp.eq.s32.totalorder %s29, 0
      %p468 = por %p466, %p467
      %p469 = scmp.ne.s32.totalorder %s455, %s456
      %p470 = scmp.eq.s32.totalorder %s30, 3
      %p471 = por %p469, %p470
      %p473 = scmp.ne.s32.totalorder %s456, %s472
      %p474 = scmp.eq.s32.totalorder %s30, 0
      %p475 = por %p473, %p474
      %p476 = scmp.le.s32.totalorder 1, %s24
      %p477 = scmp.lt.s32.totalorder %s24, 5
      %p478 = pnand %p476, %p477
      %p479 = pneg %p478
      // Predicated region
      $region9: #{vtransformer_forward.3} parent=5 // pred_check
        _
      $region10: #{vtransformer_forward.3} parent=5 // pred_check_branch
        %481 = sbr.rel (%p478) target = $region12
      $region11: #{vtransformer_forward.3} parent=5 // pred_region
        %s482 = ssub.s32 %s24, 1
        // Predicated region
        $region13: #{vtransformer_forward.3} parent=11 // pred_check
          %p483 = pneg %p146
        $region14: #{vtransformer_forward.3} parent=11 // pred_check_branch
          %485 = sbr.rel (%p483) target = $region16
        $region15: #{vtransformer_forward.3} parent=11 // pred_region
          %p486 = scmp.lt.s32.totalorder %s33, 1
          %s487 = scalar_select %p486, %s33, 1
          %s488 = smul.addr %s487, 4
          %s489 = smul.addr %s488, 4
          %s490 = scalar_lea.vmem %s3, %s489
        $region16: #{vtransformer_forward.3} parent=11 // pred_fallthru
          _
        // Predicated region
        $region17: #{vtransformer_forward.3} parent=11 // pred_check
          %p491 = pneg %p167
        $region18: #{vtransformer_forward.3} parent=11 // pred_check_branch
          %493 = sbr.rel (%p491) target = $region20
        $region19: #{vtransformer_forward.3} parent=11 // pred_region
          _
        $region20: #{vtransformer_forward.3} parent=11 // pred_fallthru
          _
        // Predicated region
        $region21: #{vtransformer_forward.3} parent=11 // pred_check
          %p494 = pneg %p188
        $region22: #{vtransformer_forward.3} parent=11 // pred_check_branch
          %496 = sbr.rel (%p494) target = $region24
        $region23: #{vtransformer_forward.3} parent=11 // pred_region
          _
        $region24: #{vtransformer_forward.3} parent=11 // pred_fallthru
          _
        // Predicated region
        $region25: #{vtransformer_forward.3} parent=11 // pred_check
          %p497 = pneg %p209
        $region26: #{vtransformer_forward.3} parent=11 // pred_check_branch
          %499 = sbr.rel (%p497) target = $region28
        $region27: #{vtransformer_forward.3} parent=11 // pred_region
          _
        $region28: #{vtransformer_forward.3} parent=11 // pred_fallthru
          _
        // Predicated region
        $region29: #{vtransformer_forward.3} parent=11 // pred_check
          %p500 = pneg %p230
        $region30: #{vtransformer_forward.3} parent=11 // pred_check_branch
          %502 = sbr.rel (%p500) target = $region32
        $region31: #{vtransformer_forward.3} parent=11 // pred_region
          _
        $region32: #{vtransformer_forward.3} parent=11 // pred_fallthru
          _
        // Predicated region
        $region33: #{vtransformer_forward.3} parent=11 // pred_check
          %p503 = pneg %p251
        $region34: #{vtransformer_forward.3} parent=11 // pred_check_branch
          %505 = sbr.rel (%p503) target = $region36
        $region35: #{vtransformer_forward.3} parent=11 // pred_region
          _
        $region36: #{vtransformer_forward.3} parent=11 // pred_fallthru
          _
        // Predicated region
        $region37: #{vtransformer_forward.3} parent=11 // pred_check
          %p506 = pneg %p272
        $region38: #{vtransformer_forward.3} parent=11 // pred_check_branch
          %508 = sbr.rel (%p506) target = $region40
        $region39: #{vtransformer_forward.3} parent=11 // pred_region
          _
        $region40: #{vtransformer_forward.3} parent=11 // pred_fallthru
          _
        // Predicated region
        $region41: #{vtransformer_forward.3} parent=11 // pred_check
          %p509 = pneg %p293
        $region42: #{vtransformer_forward.3} parent=11 // pred_check_branch
          %511 = sbr.rel (%p509) target = $region44
        $region43: #{vtransformer_forward.3} parent=11 // pred_region
          _
        $region44: #{vtransformer_forward.3} parent=11 // pred_fallthru
          _
        // Predicated region
        $region45: #{vtransformer_forward.3} parent=11 // pred_check
          %p512 = pneg %p314
        $region46: #{vtransformer_forward.3} parent=11 // pred_check_branch
          %514 = sbr.rel (%p512) target = $region48
        $region47: #{vtransformer_forward.3} parent=11 // pred_region
          _
        $region48: #{vtransformer_forward.3} parent=11 // pred_fallthru
          _
        // Predicated region
        $region49: #{vtransformer_forward.3} parent=11 // pred_check
          %p515 = pneg %p335
        $region50: #{vtransformer_forward.3} parent=11 // pred_check_branch
          %517 = sbr.rel (%p515) target = $region52
        $region51: #{vtransformer_forward.3} parent=11 // pred_region
          _
        $region52: #{vtransformer_forward.3} parent=11 // pred_fallthru
          _
        // Predicated region
        $region53: #{vtransformer_forward.3} parent=11 // pred_check
          %p518 = pneg %p356
        $region54: #{vtransformer_forward.3} parent=11 // pred_check_branch
          %520 = sbr.rel (%p518) target = $region56
        $region55: #{vtransformer_forward.3} parent=11 // pred_region
          _
        $region56: #{vtransformer_forward.3} parent=11 // pred_fallthru
          _
        // Predicated region
        $region57: #{vtransformer_forward.3} parent=11 // pred_check
          %p521 = pneg %p377
        $region58: #{vtransformer_forward.3} parent=11 // pred_check_branch
          %523 = sbr.rel (%p521) target = $region60
        $region59: #{vtransformer_forward.3} parent=11 // pred_region
          _
        $region60: #{vtransformer_forward.3} parent=11 // pred_fallthru
          _
        // Predicated region
        $region61: #{vtransformer_forward.3} parent=11 // pred_check
          %p524 = pneg %p398
        $region62: #{vtransformer_forward.3} parent=11 // pred_check_branch
          %526 = sbr.rel (%p524) target = $region64
        $region63: #{vtransformer_forward.3} parent=11 // pred_region
          _
        $region64: #{vtransformer_forward.3} parent=11 // pred_fallthru
          _
        // Predicated region
        $region65: #{vtransformer_forward.3} parent=11 // pred_check
          %p527 = pneg %p419
        $region66: #{vtransformer_forward.3} parent=11 // pred_check_branch
          %529 = sbr.rel (%p527) target = $region68
        $region67: #{vtransformer_forward.3} parent=11 // pred_region
          _
        $region68: #{vtransformer_forward.3} parent=11 // pred_fallthru
          _
        // Predicated region
        $region69: #{vtransformer_forward.3} parent=11 // pred_check
          %p530 = pneg %p440
        $region70: #{vtransformer_forward.3} parent=11 // pred_check_branch
          %532 = sbr.rel (%p530) target = $region72
        $region71: #{vtransformer_forward.3} parent=11 // pred_region
          _
        $region72: #{vtransformer_forward.3} parent=11 // pred_fallthru
          _
      $region12: #{vtransformer_forward.3} parent=5 // pred_fallthru
        _
      %p533 = scmp.lt.s32.totalorder %s24, 4
      // Predicated region
      $region73: #{vtransformer_forward.3} parent=5 // pred_check
        %p534 = pneg %p533
      $region74: #{vtransformer_forward.3} parent=5 // pred_check_branch
        %536 = sbr.rel (%p534) target = $region76
      $region75: #{vtransformer_forward.3} parent=5 // pred_region
        // Predicated region
        $region77: #{vtransformer_forward.3} parent=75 // pred_check
          %p537 = pneg %p58
        $region78: #{vtransformer_forward.3} parent=75 // pred_check_branch
          %539 = sbr.rel (%p537) target = $region80
        $region79: #{vtransformer_forward.3} parent=75 // pred_region
          %p540 = scmp.lt.s32.totalorder %s31, 1
          %s541 = scalar_select %p540, %s31, 1
          %p542 = scmp.lt.s32.totalorder %s32, 1
          %s543 = scalar_select %p542, %s32, 1
          %s544 = smul.addr %s541, 2
          %s545 = sadd.s32 %s543, %s544
          %s546 = smul.addr %s545, 8
          %s547 = scalar_lea.vmem %s0, %s546
        $region80: #{vtransformer_forward.3} parent=75 // pred_fallthru
          _
        // Predicated region
        $region81: #{vtransformer_forward.3} parent=75 // pred_check
          %p548 = pneg %p86
        $region82: #{vtransformer_forward.3} parent=75 // pred_check_branch
          %550 = sbr.rel (%p548) target = $region84
        $region83: #{vtransformer_forward.3} parent=75 // pred_region
          %p551 = scmp.lt.s32.totalorder %s31, 1
          %s552 = scalar_select %p551, %s31, 1
          %p553 = scmp.lt.s32.totalorder %s32, 1
          %s554 = scalar_select %p553, %s32, 1
          %s555 = smul.addr %s552, 2
          %s556 = sadd.s32 %s554, %s555
          %s557 = smul.addr %s556, 8
          %s558 = scalar_lea.vmem %s1, %s557
        $region84: #{vtransformer_forward.3} parent=75 // pred_fallthru
          _
        // Predicated region
        $region85: #{vtransformer_forward.3} parent=75 // pred_check
          %p559 = pneg %p114
        $region86: #{vtransformer_forward.3} parent=75 // pred_check_branch
          %561 = sbr.rel (%p559) target = $region88
        $region87: #{vtransformer_forward.3} parent=75 // pred_region
          %s562 = sand.u32 %s104, 1
          %s563 = sand.u32 %s104, 1
          %s564 = smul.addr %s563, 32
          %s565 = scalar_lea.vmem [#allocation2], %s564
          %s566 = smul.addr %s31, 8
          %s567 = sadd.s32 %s32, %s566
          %s568 = smul.addr %s567, 8
          %s569 = scalar_lea.vmem %s2, %s568
          // Predicated region
          $region89: #{vtransformer_forward.3} parent=87 // pred_check
            _
          $region90: #{vtransformer_forward.3} parent=87 // pred_check_branch
            %571 = sbr.rel (0) target = $region92
          $region91: #{vtransformer_forward.3} parent=87 // pred_region
            // Predicated region
            $region93: #{vtransformer_forward.3} parent=91 // pred_check
              _
            $region94: #{vtransformer_forward.3} parent=91 // pred_check_branch
              %573 = sbr.rel (0) target = $region96
            $region95: #{vtransformer_forward.3} parent=91 // pred_region
              // Predicated region
              $region108: #{vtransformer_forward.3} parent=95 // pred_check
                _
              $region109: #{vtransformer_forward.3} parent=95 // pred_check_branch
                %595 = sbr.rel (0) target = $region111
              $region110: #{vtransformer_forward.3} parent=95 // pred_region
                loop: start=0, step=1, limit=1
                $region112: #{vtransformer_forward.3} parent=110 // loop_pre_header
                  _
                $region113: #{vtransformer_forward.3} parent=110 // loop_header
                  %s597 = sphi 0, %s601
                  %p598 = scmp.ge.s32.totalorder %s597, 1
                  %s602 = sphi %s569, %s569
                  %s603 = sphi %s565, %s565
                $region114: #{vtransformer_forward.3} parent=110 // loop_header_branch
                  %600 = sbr.rel (%p598) target = $region118
                $region115: #{vtransformer_forward.3} parent=110 // loop_body
                  %v604 = vld [vmem:[%s602] sm:$0xff]
                  %605 = vst [vmem:[%s603] sm:$0xff] %v604
                  %v606 = vld [vmem:[%s602 + $0x10] sm:$0xff]
                  %607 = vst [vmem:[%s603 + $0x8] sm:$0xff] %v606
                  %v608 = vld [vmem:[%s602 + $0x20] sm:$0xff]
                  %609 = vst [vmem:[%s603 + $0x10] sm:$0xff] %v608
                  %v610 = vld [vmem:[%s602 + $0x30] sm:$0xff]
                  %611 = vst [vmem:[%s603 + $0x18] sm:$0xff] %v610
                $region116: #{vtransformer_forward.3} parent=110 // loop_footer
                  %s601 = sadd.s32 1, %s597
                $region117: #{vtransformer_forward.3} parent=110 // loop_footer_branch
                  %596 = sbr.rel target = $region113
                $region118: #{vtransformer_forward.3} parent=110 // loop_exit
                  _
              $region111: #{vtransformer_forward.3} parent=95 // pred_fallthru
                _
              // Predicated region
              $region119: #{vtransformer_forward.3} parent=95 // pred_check
                _
              $region120: #{vtransformer_forward.3} parent=95 // pred_check_branch
                %613 = sbr.rel target = $region122
              $region121: #{vtransformer_forward.3} parent=95 // pred_region
                _
              $region122: #{vtransformer_forward.3} parent=95 // pred_fallthru
                _
            $region96: #{vtransformer_forward.3} parent=91 // pred_fallthru
              _
            // Predicated region
            $region97: #{vtransformer_forward.3} parent=91 // pred_check
              _
            $region98: #{vtransformer_forward.3} parent=91 // pred_check_branch
              %575 = sbr.rel target = $region100
            $region99: #{vtransformer_forward.3} parent=91 // pred_region
              %s577 = ssub.s32 256, 1
              loop: start=0, step=1, limit=1
              $region101: #{vtransformer_forward.3} parent=99 // loop_pre_header
                _
              $region102: #{vtransformer_forward.3} parent=99 // loop_header
                %s579 = sphi 0, %s583
                %p580 = scmp.ge.s32.totalorder %s579, 1
                %s584 = sphi %s569, %s569
                %s585 = sphi %s565, %s565
              $region103: #{vtransformer_forward.3} parent=99 // loop_header_branch
                %582 = sbr.rel (%p580) target = $region107
              $region104: #{vtransformer_forward.3} parent=99 // loop_body
                %v586 = vld [vmem:[%s584] sm:%s577]
                %587 = vst [vmem:[%s585] sm:%s577] %v586
                %v588 = vld [vmem:[%s584 + $0x10] sm:%s577]
                %589 = vst [vmem:[%s585 + $0x8] sm:%s577] %v588
                %v590 = vld [vmem:[%s584 + $0x20] sm:%s577]
                %591 = vst [vmem:[%s585 + $0x10] sm:%s577] %v590
                %v592 = vld [vmem:[%s584 + $0x30] sm:%s577]
                %593 = vst [vmem:[%s585 + $0x18] sm:%s577] %v592
              $region105: #{vtransformer_forward.3} parent=99 // loop_footer
                %s583 = sadd.s32 1, %s579
              $region106: #{vtransformer_forward.3} parent=99 // loop_footer_branch
                %578 = sbr.rel target = $region102
              $region107: #{vtransformer_forward.3} parent=99 // loop_exit
                _
            $region100: #{vtransformer_forward.3} parent=91 // pred_fallthru
              _
          $region92: #{vtransformer_forward.3} parent=87 // pred_fallthru
            _
          %614 = vnop
        $region88: #{vtransformer_forward.3} parent=75 // pred_fallthru
          _
      $region76: #{vtransformer_forward.3} parent=5 // pred_fallthru
        _
      %p615 = scmp.le.s32.totalorder 1, %s24
      %p616 = scmp.lt.s32.totalorder %s24, 5
      %p617 = pnand %p615, %p616
      %p618 = pneg %p617
      // Predicated region
      $region123: #{vtransformer_forward.3} parent=5 // pred_check
        _
      $region124: #{vtransformer_forward.3} parent=5 // pred_check_branch
        %620 = sbr.rel (%p617) target = $region126
      $region125: #{vtransformer_forward.3} parent=5 // pred_region
        %s621 = ssub.s32 %s24, 1
        %s622 = sand.u32 %s107, 1
        %s623 = sand.u32 %s107, 1
        %s624 = smul.addr %s623, 32
        %s625 = scalar_lea.vmem [#allocation2], %s624
        // Predicated region
        $region127: #{vtransformer_forward.3} parent=125 // pred_check
          %p626 = pneg %p120
        $region128: #{vtransformer_forward.3} parent=125 // pred_check_branch
          %628 = sbr.rel (%p626) target = $region130
        $region129: #{vtransformer_forward.3} parent=125 // pred_region
          _
        $region130: #{vtransformer_forward.3} parent=125 // pred_fallthru
          _
        %p629 = scmp.lt.s32.totalorder %s33, 1
        %s630 = scalar_select %p629, %s33, 1
        %p631 = scmp.lt.s32.totalorder %s34, 1
        %s632 = scalar_select %p631, %s34, 1
        %s633 = smul.addr %s630, 2
        %s634 = sadd.s32 %s632, %s633
        %s635 = smul.addr %s634, 8
        %s636 = scalar_lea.vmem %s0, %s635
        %p637 = pneg %p64
        %p638 = pneg %p61
        %p639 = scmp.lt.s32.totalorder %s33, 1
        %s640 = scalar_select %p639, %s33, 1
        %p641 = scmp.lt.s32.totalorder %s34, 1
        %s642 = scalar_select %p641, %s34, 1
        %s643 = smul.addr %s640, 2
        %s644 = sadd.s32 %s642, %s643
        %s645 = smul.addr %s644, 8
        %s646 = scalar_lea.vmem %s1, %s645
        %p647 = pneg %p92
        %p648 = pneg %p89
        %s649 = sand.u32 %s107, 1
        %s650 = sand.u32 %s107, 1
        %s651 = smul.addr %s650, 32
        %s652 = scalar_lea.vmem [#allocation2], %s651
        %p653 = pneg %p120
        %p654 = pneg %p117
        %p655 = scmp.lt.s32.totalorder %s33, 1
        %s656 = scalar_select %p655, %s33, 1
        %s657 = smul.addr %s656, 4
        %s658 = smul.addr %s657, 4
        %s659 = scalar_lea.vmem %s3, %s658
        %p660 = pneg %p146
        %p661 = pneg %p143
        %p662 = pneg %p167
        %p663 = pneg %p164
        %p664 = pneg %p188
        %p665 = pneg %p185
        %p666 = pneg %p209
        %p667 = pneg %p206
        %p668 = pneg %p230
        %p669 = pneg %p227
        %p670 = pneg %p251
        %p671 = pneg %p248
        %p672 = pneg %p272
        %p673 = pneg %p269
        %p674 = pneg %p293
        %p675 = pneg %p290
        %p676 = pneg %p314
        %p677 = pneg %p311
        %p678 = pneg %p335
        %p679 = pneg %p332
        %p680 = pneg %p356
        %p681 = pneg %p353
        %p682 = pneg %p377
        %p683 = pneg %p374
        %p684 = pneg %p398
        %p685 = pneg %p395
        %p686 = pneg %p419
        %p687 = pneg %p416
        %p688 = pneg %p440
        %p689 = pneg %p437
        %p690 = pneg %p468
        %p691 = pneg %p465
        %p692 = scmp.lt.s32.totalorder %s33, 1
        %s693 = scalar_select %p692, %s33, 1
        %p694 = scmp.lt.s32.totalorder %s34, 1
        %s695 = scalar_select %p694, %s34, 1
        %s696 = smul.addr %s693, 2
        %s697 = sadd.s32 %s695, %s696
        %s698 = smul.addr %s697, 8
        %s699 = scalar_lea.vmem %s18, %s698
        %p700 = scmp.lt.s32.totalorder %s33, 1
        %s701 = scalar_select %p700, %s33, 1
        %p702 = scmp.lt.s32.totalorder %s34, 1
        %s703 = scalar_select %p702, %s34, 1
        %s704 = smul.addr %s701, 2
        %s705 = sadd.s32 %s703, %s704
        %s706 = smul.addr %s705, 8
        %s707 = scalar_lea.vmem %s0, %s706
        %p708 = scmp.lt.s32.totalorder %s33, 1
        %s709 = scalar_select %p708, %s33, 1
        %p710 = scmp.lt.s32.totalorder %s34, 1
        %s711 = scalar_select %p710, %s34, 1
        %s712 = smul.addr %s709, 2
        %s713 = sadd.s32 %s711, %s712
        %s714 = smul.addr %s713, 8
        %s715 = scalar_lea.vmem %s1, %s714
        %p716 = scmp.lt.s32.totalorder %s33, 1
        %s717 = scalar_select %p716, %s33, 1
        %s718 = smul.addr %s717, 4
        %s719 = smul.addr %s718, 4
        %s720 = scalar_lea.vmem %s3, %s719
        %p721 = scmp.lt.s32.totalorder %s33, 1
        %s722 = scalar_select %p721, %s33, 1
        %p723 = scmp.lt.s32.totalorder %s34, 1
        %s724 = scalar_select %p723, %s34, 1
        %s725 = smul.addr %s722, 2
        %s726 = sadd.s32 %s724, %s725
        %s727 = smul.addr %s726, 8
        %s728 = scalar_lea.vmem %s18, %s727
        %v730 = vld [vmem:[%s4] sm:$0xf]
        %v731 = vld [vmem:[%s5] sm:$0x1]
        %v732 = vld [vmem:[%s6] sm:$0xf]
        %v733 = vld [vmem:[%s6 + $0x4] sm:$0xf]
        %v734 = vld [vmem:[%s6 + $0x8] sm:$0xf]
        %v735 = vld [vmem:[%s6 + $0xc] sm:$0xf]
        %v736 = vld [vmem:[%s6 + $0x10] sm:$0xf]
        %v737 = vld [vmem:[%s6 + $0x14] sm:$0xf]
        %v738 = vld [vmem:[%s6 + $0x18] sm:$0xf]
        %v739 = vld [vmem:[%s6 + $0x1c] sm:$0xf]
        %v740 = vld [vmem:[%s6 + $0x20] sm:$0xf]
        %v741 = vld [vmem:[%s6 + $0x24] sm:$0xf]
        %v742 = vld [vmem:[%s6 + $0x28] sm:$0xf]
        %v743 = vld [vmem:[%s6 + $0x2c] sm:$0xf]
        %v744 = vld [vmem:[%s6 + $0x30] sm:$0xf]
        %v745 = vld [vmem:[%s6 + $0x34] sm:$0xf]
        %v746 = vld [vmem:[%s6 + $0x38] sm:$0xf]
        %v747 = vld [vmem:[%s6 + $0x3c] sm:$0xf]
        %v748 = vld [vmem:[%s7] sm:$0x1]
        %v749 = vld [vmem:[%s8] sm:$0x7]
        %v750 = vld [vmem:[%s9] sm:$0x1]
        %v751 = vld [vmem:[%s10] sm:$0xf]
        %v752 = vld [vmem:[%s10 + $0x4] sm:$0xf]
        %v753 = vld [vmem:[%s10 + $0x8] sm:$0xf]
        %v754 = vld [vmem:[%s10 + $0xc] sm:$0xf]
        %v755 = vld [vmem:[%s10 + $0x10] sm:$0xf]
        %v756 = vld [vmem:[%s10 + $0x14] sm:$0xf]
        %v757 = vld [vmem:[%s10 + $0x18] sm:$0xf]
        %v758 = vld [vmem:[%s10 + $0x1c] sm:$0xf]
        %v759 = vld [vmem:[%s10 + $0x20] sm:$0xf]
        %v760 = vld [vmem:[%s10 + $0x24] sm:$0xf]
        %v761 = vld [vmem:[%s10 + $0x28] sm:$0xf]
        %v762 = vld [vmem:[%s10 + $0x2c] sm:$0xf]
        %v763 = vld [vmem:[%s10 + $0x30] sm:$0xf]
        %v764 = vld [vmem:[%s10 + $0x34] sm:$0xf]
        %v765 = vld [vmem:[%s10 + $0x38] sm:$0xf]
        %v766 = vld [vmem:[%s10 + $0x3c] sm:$0xf]
        %v767 = vld [vmem:[%s11] sm:$0x1]
        %v768 = vld [vmem:[%s12] sm:$0xf]
        %v769 = vld [vmem:[%s12 + $0x4] sm:$0xf]
        %v770 = vld [vmem:[%s12 + $0x8] sm:$0xf]
        %v771 = vld [vmem:[%s12 + $0xc] sm:$0xf]
        %v772 = vld [vmem:[%s12 + $0x10] sm:$0xf]
        %v773 = vld [vmem:[%s12 + $0x14] sm:$0xf]
        %v774 = vld [vmem:[%s12 + $0x18] sm:$0xf]
        %v775 = vld [vmem:[%s12 + $0x1c] sm:$0xf]
        %v776 = vld [vmem:[%s12 + $0x20] sm:$0xf]
        %v777 = vld [vmem:[%s12 + $0x24] sm:$0xf]
        %v778 = vld [vmem:[%s12 + $0x28] sm:$0xf]
        %v779 = vld [vmem:[%s12 + $0x2c] sm:$0xf]
        %v780 = vld [vmem:[%s12 + $0x30] sm:$0xf]
        %v781 = vld [vmem:[%s12 + $0x34] sm:$0xf]
        %v782 = vld [vmem:[%s12 + $0x38] sm:$0xf]
        %v783 = vld [vmem:[%s12 + $0x3c] sm:$0xf]
        %v784 = vld [vmem:[%s13] sm:$0x1]
        %v785 = vld [vmem:[%s14] sm:$0xf]
        %v786 = vld [vmem:[%s14 + $0x4] sm:$0xf]
        %v787 = vld [vmem:[%s14 + $0x8] sm:$0xf]
        %v788 = vld [vmem:[%s14 + $0xc] sm:$0xf]
        %v789 = vld [vmem:[%s14 + $0x10] sm:$0xf]
        %v790 = vld [vmem:[%s14 + $0x14] sm:$0xf]
        %v791 = vld [vmem:[%s14 + $0x18] sm:$0xf]
        %v792 = vld [vmem:[%s14 + $0x1c] sm:$0xf]
        %v793 = vld [vmem:[%s14 + $0x20] sm:$0xf]
        %v794 = vld [vmem:[%s14 + $0x24] sm:$0xf]
        %v795 = vld [vmem:[%s14 + $0x28] sm:$0xf]
        %v796 = vld [vmem:[%s14 + $0x2c] sm:$0xf]
        %v797 = vld [vmem:[%s14 + $0x30] sm:$0xf]
        %v798 = vld [vmem:[%s14 + $0x34] sm:$0xf]
        %v799 = vld [vmem:[%s14 + $0x38] sm:$0xf]
        %v800 = vld [vmem:[%s14 + $0x3c] sm:$0xf]
        %v801 = vld [vmem:[%s15] sm:$0x1]
        %v802 = vld [vmem:[%s16] sm:$0xf]
        %v803 = vld [vmem:[%s16 + $0x4] sm:$0xf]
        %v804 = vld [vmem:[%s16 + $0x8] sm:$0xf]
        %v805 = vld [vmem:[%s16 + $0xc] sm:$0xf]
        %v806 = vld [vmem:[%s16 + $0x10] sm:$0xf]
        %v807 = vld [vmem:[%s16 + $0x14] sm:$0xf]
        %v808 = vld [vmem:[%s16 + $0x18] sm:$0xf]
        %v809 = vld [vmem:[%s16 + $0x1c] sm:$0xf]
        %v810 = vld [vmem:[%s16 + $0x20] sm:$0xf]
        %v811 = vld [vmem:[%s16 + $0x24] sm:$0xf]
        %v812 = vld [vmem:[%s16 + $0x28] sm:$0xf]
        %v813 = vld [vmem:[%s16 + $0x2c] sm:$0xf]
        %v814 = vld [vmem:[%s16 + $0x30] sm:$0xf]
        %v815 = vld [vmem:[%s16 + $0x34] sm:$0xf]
        %v816 = vld [vmem:[%s16 + $0x38] sm:$0xf]
        %v817 = vld [vmem:[%s16 + $0x3c] sm:$0xf]
        %v818 = vld [vmem:[%s17] sm:$0x1]
        %v819 = vld [vmem:[%s707] sm:$0xff]
        %v820 = vpack.c.bf16 %v819, %v819
        %v822 = vperm.slane %v731, 0
        %vm824 = vcmask 64512
        %v826 = vsel %vm824, %v820, 0
        %vm828 = vcmask 1043456
        %v830 = vsel %vm828, %v730, 0
        %832 = vmatpush.bf16.msra.mxu0 0
        %833 = vmatpush.bf16.msra.mxu0 0
        %834 = vmatpush.bf16.msra.mxu0 0
        %835 = vmatpush.bf16.msra.mxu0 0
        %836 = vmatpush.bf16.msra.mxu0 0
        %837 = vmatpush.bf16.msra.mxu0 0
        %838 = vmatpush.bf16.msra.mxu0 0
        %839 = vmatpush.bf16.msra.mxu0 %v830
        %840 = vmatmul.bf16.gmra.mxu0 %v826
        %v841 = vpop.f32.mrf.mxu0
        %v842 = vadd.f32 %v822, %v841
        %v843 = vpop.f32.mrf.mxu0
        %844 = vdwg.mxu0
        %v845 = vpack.c.bf16 %v842, %v842
        %v847 = vperm.slane %v748, 0
        %v865 = vunpack.c.l.b16 %v732
        %v866 = vunpack.c.l.b16 %v733
        %v867 = vunpack.c.l.b16 %v734
        %v868 = vunpack.c.l.b16 %v735
        %v869 = vunpack.c.l.b16 %v736
        %v870 = vunpack.c.l.b16 %v737
        %v871 = vunpack.c.l.b16 %v738
        %v872 = vunpack.c.l.b16 %v739
        %v873 = vunpack.c.l.b16 %v740
        %v874 = vunpack.c.l.b16 %v741
        %v875 = vunpack.c.l.b16 %v742
        %v876 = vunpack.c.l.b16 %v743
        %v877 = vunpack.c.l.b16 %v744
        %v878 = vunpack.c.l.b16 %v745
        %v879 = vunpack.c.l.b16 %v746
        %v880 = vunpack.c.l.b16 %v747
        %v881 = vpack.c.b16 %v866, %v865
        %v882 = vpack.c.b16 %v868, %v867
        %v883 = vpack.c.b16 %v870, %v869
        %v884 = vpack.c.b16 %v872, %v871
        %v885 = vpack.c.b16 %v874, %v873
        %v886 = vpack.c.b16 %v876, %v875
        %v887 = vpack.c.b16 %v878, %v877
        %v888 = vpack.c.b16 %v880, %v879
        %897 = vmatpush.bf16.msra.mxu0 %v888
        %898 = vmatpush.bf16.msra.mxu0 %v887
        %899 = vmatpush.bf16.msra.mxu0 %v886
        %900 = vmatpush.bf16.msra.mxu0 %v885
        %901 = vmatpush.bf16.msra.mxu0 %v884
        %902 = vmatpush.bf16.msra.mxu0 %v883
        %903 = vmatpush.bf16.msra.mxu0 %v882
        %904 = vmatpush.bf16.msra.mxu0 %v881
        %905 = vmatmul.bf16.gmra.mxu0 %v845
        %v906 = vpop.f32.mrf.mxu0
        %v907 = vadd.f32 %v847, %v906
        %v908 = vpop.f32.mrf.mxu0
        %909 = vdwg.mxu0
        %v910 = vld [vmem:[%s715] sm:$0xff]
        %v911 = vlaneseq
        %v912 = vand.u32 %v911, 127
        %s913 = smul.u32 0, 2
        %s914 = smul.addr %s913, 4
        %s915 = scalar_lea.vmem %s720, %s914
        %v916 = vld [vmem:[%s915] sm:$0xff]
        %v917 = vld [vmem:[%s915 + $0x8] sm:$0xff]
        %918 = vset.pattern.permute.xlu0 0
        %919 = vperm.xlu0 %918, %v910
        %v920 = vpop.permute.xlu0 %919
        %vm921 = vcmp.eq.s32.totalorder %v912, %v920
        %v922 = vsel %vm921, 1, 0
        %v923 = vcvt.s32.f32 %v922
        %v924 = vpack.c.bf16 %v923, %v923
        %v927 = vunpack.c.l.b16 %v916
        %v928 = vunpack.c.h.b16 %v916
        %v929 = vunpack.c.l.b16 %v917
        %v930 = vunpack.c.h.b16 %v917
        %v931 = vpack.c.b16 %v929, %v927
        %v932 = vpack.c.b16 %v930, %v928
        %vm935 = vcmask 130048
        %v937 = vsel %vm935, %v924, 0
        %939 = vmatpush.bf16.msra.mxu0 0
        %940 = vmatpush.bf16.msra.mxu0 0
        %941 = vmatpush.bf16.msra.mxu0 0
        %942 = vmatpush.bf16.msra.mxu0 0
        %943 = vmatpush.bf16.msra.mxu0 0
        %944 = vmatpush.bf16.msra.mxu0 0
        %945 = vmatpush.bf16.msra.mxu0 0
        %946 = vmatpush.bf16.msra.mxu0 %v931
        %947 = vmatmul.bf16.gmra.mxu0 %v937
        %v948 = vpop.f32.mrf.mxu0
        %v949 = vadd.f32 0.0, %v948
        %v950 = vpop.f32.mrf.mxu0
        %951 = vdwg.mxu0
        %952 = vmatpush.bf16.msra.mxu0 0
        %953 = vmatpush.bf16.msra.mxu0 0
        %954 = vmatpush.bf16.msra.mxu0 0
        %955 = vmatpush.bf16.msra.mxu0 0
        %956 = vmatpush.bf16.msra.mxu0 0
        %957 = vmatpush.bf16.msra.mxu0 0
        %958 = vmatpush.bf16.msra.mxu0 0
        %959 = vmatpush.bf16.msra.mxu0 %v932
        %960 = vmatmul.bf16.gmra.mxu0 %v937
        %v961 = vpop.f32.mrf.mxu0
        %v962 = vadd.f32 0.0, %v961
        %v963 = vpop.f32.mrf.mxu0
        %964 = vdwg.mxu0
        %v965 = vld [vmem:[%s625] sm:$0xff]
        %967 = vset.pattern.permute.xlu0 0
        %968 = vperm.xlu0 %967, %v965
        %v969 = vpop.permute.xlu0 %968
        %v971 = vperm.slane %v749, 0
        %v972 = vmul.f32 %v969, %v971
        %973 = vset.pattern.permute.xlu0 1
        %974 = vperm.xlu0 %973, %v965
        %v975 = vpop.permute.xlu0 %974
        %v977 = vperm.slane %v749, 1
        %v978 = vmul.f32 %v975, %v977
        %v979 = vadd.f32 %v972, %v978
        %980 = vset.pattern.permute.xlu0 2
        %981 = vperm.xlu0 %980, %v965
        %v982 = vpop.permute.xlu0 %981
        %v984 = vperm.slane %v749, 2
        %v985 = vmul.f32 %v982, %v984
        %v986 = vadd.f32 %v979, %v985
        %v988 = vperm.slane %v750, 0
        %v990 = vadd.f32 %v986, %v988
        %v991 = vmax.f32 %v990, 0.0
        %v992 = vpack.c.bf16 %v991, %v991
        %v994 = vperm.slane %v767, 0
        %v1012 = vunpack.c.l.b16 %v751
        %v1013 = vunpack.c.l.b16 %v752
        %v1014 = vunpack.c.l.b16 %v753
        %v1015 = vunpack.c.l.b16 %v754
        %v1016 = vunpack.c.l.b16 %v755
        %v1017 = vunpack.c.l.b16 %v756
        %v1018 = vunpack.c.l.b16 %v757
        %v1019 = vunpack.c.l.b16 %v758
        %v1020 = vunpack.c.l.b16 %v759
        %v1021 = vunpack.c.l.b16 %v760
        %v1022 = vunpack.c.l.b16 %v761
        %v1023 = vunpack.c.l.b16 %v762
        %v1024 = vunpack.c.l.b16 %v763
        %v1025 = vunpack.c.l.b16 %v764
        %v1026 = vunpack.c.l.b16 %v765
        %v1027 = vunpack.c.l.b16 %v766
        %v1028 = vpack.c.b16 %v1013, %v1012
        %v1029 = vpack.c.b16 %v1015, %v1014
        %v1030 = vpack.c.b16 %v1017, %v1016
        %v1031 = vpack.c.b16 %v1019, %v1018
        %v1032 = vpack.c.b16 %v1021, %v1020
        %v1033 = vpack.c.b16 %v1023, %v1022
        %v1034 = vpack.c.b16 %v1025, %v1024
        %v1035 = vpack.c.b16 %v1027, %v1026
        %1044 = vmatpush.bf16.msra.mxu0 %v1035
        %1045 = vmatpush.bf16.msra.mxu0 %v1034
        %1046 = vmatpush.bf16.msra.mxu0 %v1033
        %1047 = vmatpush.bf16.msra.mxu0 %v1032
        %1048 = vmatpush.bf16.msra.mxu0 %v1031
        %1049 = vmatpush.bf16.msra.mxu0 %v1030
        %1050 = vmatpush.bf16.msra.mxu0 %v1029
        %1051 = vmatpush.bf16.msra.mxu0 %v1028
        %1052 = vmatmul.bf16.gmra.mxu0 %v992
        %v1053 = vpop.f32.mrf.mxu0
        %v1054 = vadd.f32 %v994, %v1053
        %v1055 = vpop.f32.mrf.mxu0
        %1056 = vdwg.mxu0
        %v1057 = vsub.f32 %v907, %v949
        %v1058 = vadd.f32 %v1057, %v1054
        %v1059 = vpack.c.bf16 %v1058, %v1058
        %v1061 = vperm.slane %v784, 0
        %v1079 = vunpack.c.l.b16 %v768
        %v1080 = vunpack.c.l.b16 %v769
        %v1081 = vunpack.c.l.b16 %v770
        %v1082 = vunpack.c.l.b16 %v771
        %v1083 = vunpack.c.l.b16 %v772
        %v1084 = vunpack.c.l.b16 %v773
        %v1085 = vunpack.c.l.b16 %v774
        %v1086 = vunpack.c.l.b16 %v775
        %v1087 = vunpack.c.l.b16 %v776
        %v1088 = vunpack.c.l.b16 %v777
        %v1089 = vunpack.c.l.b16 %v778
        %v1090 = vunpack.c.l.b16 %v779
        %v1091 = vunpack.c.l.b16 %v780
        %v1092 = vunpack.c.l.b16 %v781
        %v1093 = vunpack.c.l.b16 %v782
        %v1094 = vunpack.c.l.b16 %v783
        %v1095 = vpack.c.b16 %v1080, %v1079
        %v1096 = vpack.c.b16 %v1082, %v1081
        %v1097 = vpack.c.b16 %v1084, %v1083
        %v1098 = vpack.c.b16 %v1086, %v1085
        %v1099 = vpack.c.b16 %v1088, %v1087
        %v1100 = vpack.c.b16 %v1090, %v1089
        %v1101 = vpack.c.b16 %v1092, %v1091
        %v1102 = vpack.c.b16 %v1094, %v1093
        %1111 = vmatpush.bf16.msra.mxu0 %v1102
        %1112 = vmatpush.bf16.msra.mxu0 %v1101
        %1113 = vmatpush.bf16.msra.mxu0 %v1100
        %1114 = vmatpush.bf16.msra.mxu0 %v1099
        %1115 = vmatpush.bf16.msra.mxu0 %v1098
        %1116 = vmatpush.bf16.msra.mxu0 %v1097
        %1117 = vmatpush.bf16.msra.mxu0 %v1096
        %1118 = vmatpush.bf16.msra.mxu0 %v1095
        %1119 = vmatmul.bf16.gmra.mxu0 %v1059
        %v1120 = vpop.f32.mrf.mxu0
        %v1121 = vadd.f32 %v1061, %v1120
        %v1122 = vpop.f32.mrf.mxu0
        %1123 = vdwg.mxu0
        %v1124 = vmax.f32 %v1121, 0.0
        %v1125 = vpack.c.bf16 %v1124, %v1124
        %v1127 = vperm.slane %v801, 0
        %v1145 = vunpack.c.l.b16 %v785
        %v1146 = vunpack.c.l.b16 %v786
        %v1147 = vunpack.c.l.b16 %v787
        %v1148 = vunpack.c.l.b16 %v788
        %v1149 = vunpack.c.l.b16 %v789
        %v1150 = vunpack.c.l.b16 %v790
        %v1151 = vunpack.c.l.b16 %v791
        %v1152 = vunpack.c.l.b16 %v792
        %v1153 = vunpack.c.l.b16 %v793
        %v1154 = vunpack.c.l.b16 %v794
        %v1155 = vunpack.c.l.b16 %v795
        %v1156 = vunpack.c.l.b16 %v796
        %v1157 = vunpack.c.l.b16 %v797
        %v1158 = vunpack.c.l.b16 %v798
        %v1159 = vunpack.c.l.b16 %v799
        %v1160 = vunpack.c.l.b16 %v800
        %v1161 = vpack.c.b16 %v1146, %v1145
        %v1162 = vpack.c.b16 %v1148, %v1147
        %v1163 = vpack.c.b16 %v1150, %v1149
        %v1164 = vpack.c.b16 %v1152, %v1151
        %v1165 = vpack.c.b16 %v1154, %v1153
        %v1166 = vpack.c.b16 %v1156, %v1155
        %v1167 = vpack.c.b16 %v1158, %v1157
        %v1168 = vpack.c.b16 %v1160, %v1159
        %1177 = vmatpush.bf16.msra.mxu0 %v1168
        %1178 = vmatpush.bf16.msra.mxu0 %v1167
        %1179 = vmatpush.bf16.msra.mxu0 %v1166
        %1180 = vmatpush.bf16.msra.mxu0 %v1165
        %1181 = vmatpush.bf16.msra.mxu0 %v1164
        %1182 = vmatpush.bf16.msra.mxu0 %v1163
        %1183 = vmatpush.bf16.msra.mxu0 %v1162
        %1184 = vmatpush.bf16.msra.mxu0 %v1161
        %1185 = vmatmul.bf16.gmra.mxu0 %v1125
        %v1186 = vpop.f32.mrf.mxu0
        %v1187 = vadd.f32 %v1127, %v1186
        %v1188 = vpop.f32.mrf.mxu0
        %1189 = vdwg.mxu0
        %v1190 = vadd.f32 %v962, %v1054
        %1191 = vset.pattern.permute.xlu0 1
        %1192 = vperm.xlu0 %1191, %v910
        %v1193 = vpop.permute.xlu0 %1192
        %vm1194 = vcmp.eq.s32.totalorder %v912, %v1193
        %v1195 = vsel %vm1194, 1, 0
        %v1196 = vcvt.s32.f32 %v1195
        %v1197 = vpack.c.bf16 %v1196, %v1196
        %v1199 = vsel %vm935, %v1197, 0
        %1201 = vmatpush.bf16.msra.mxu0 0
        %1202 = vmatpush.bf16.msra.mxu0 0
        %1203 = vmatpush.bf16.msra.mxu0 0
        %1204 = vmatpush.bf16.msra.mxu0 0
        %1205 = vmatpush.bf16.msra.mxu0 0
        %1206 = vmatpush.bf16.msra.mxu0 0
        %1207 = vmatpush.bf16.msra.mxu0 0
        %1208 = vmatpush.bf16.msra.mxu0 %v931
        %1209 = vmatmul.bf16.gmra.mxu0 %v1199
        %v1210 = vpop.f32.mrf.mxu0
        %v1211 = vadd.f32 0.0, %v1210
        %v1212 = vpop.f32.mrf.mxu0
        %1213 = vdwg.mxu0
        %1214 = vmatpush.bf16.msra.mxu0 0
        %1215 = vmatpush.bf16.msra.mxu0 0
        %1216 = vmatpush.bf16.msra.mxu0 0
        %1217 = vmatpush.bf16.msra.mxu0 0
        %1218 = vmatpush.bf16.msra.mxu0 0
        %1219 = vmatpush.bf16.msra.mxu0 0
        %1220 = vmatpush.bf16.msra.mxu0 0
        %1221 = vmatpush.bf16.msra.mxu0 %v932
        %1222 = vmatmul.bf16.gmra.mxu0 %v1199
        %v1223 = vpop.f32.mrf.mxu0
        %v1224 = vadd.f32 0.0, %v1223
        %v1225 = vpop.f32.mrf.mxu0
        %1226 = vdwg.mxu0
        %s1227 = scalar_lea.vmem %s625, 8 [#allocation2]
        %v1228 = vld [vmem:[%s1227] sm:$0xff]
        %1230 = vset.pattern.permute.xlu0 0
        %1231 = vperm.xlu0 %1230, %v1228
        %v1232 = vpop.permute.xlu0 %1231
        %v1234 = vmul.f32 %v1232, %v971
        %1235 = vset.pattern.permute.xlu0 1
        %1236 = vperm.xlu0 %1235, %v1228
        %v1237 = vpop.permute.xlu0 %1236
        %v1239 = vmul.f32 %v1237, %v977
        %v1240 = vadd.f32 %v1234, %v1239
        %1241 = vset.pattern.permute.xlu0 2
        %1242 = vperm.xlu0 %1241, %v1228
        %v1243 = vpop.permute.xlu0 %1242
        %v1245 = vmul.f32 %v1243, %v984
        %v1246 = vadd.f32 %v1240, %v1245
        %v1247 = vadd.f32 %v1246, %v988
        %v1248 = vmax.f32 %v1247, 0.0
        %v1249 = vpack.c.bf16 %v1248, %v1248
        %1250 = vmatpush.bf16.msra.mxu0 %v1035
        %1251 = vmatpush.bf16.msra.mxu0 %v1034
        %1252 = vmatpush.bf16.msra.mxu0 %v1033
        %1253 = vmatpush.bf16.msra.mxu0 %v1032
        %1254 = vmatpush.bf16.msra.mxu0 %v1031
        %1255 = vmatpush.bf16.msra.mxu0 %v1030
        %1256 = vmatpush.bf16.msra.mxu0 %v1029
        %1257 = vmatpush.bf16.msra.mxu0 %v1028
        %1258 = vmatmul.bf16.gmra.mxu0 %v1249
        %v1259 = vpop.f32.mrf.mxu0
        %v1260 = vadd.f32 %v994, %v1259
        %v1261 = vpop.f32.mrf.mxu0
        %1262 = vdwg.mxu0
        %v1263 = vsub.f32 %v907, %v1211
        %v1264 = vadd.f32 %v1263, %v1260
        %v1265 = vpack.c.bf16 %v1264, %v1264
        %1266 = vmatpush.bf16.msra.mxu0 %v1102
        %1267 = vmatpush.bf16.msra.mxu0 %v1101
        %1268 = vmatpush.bf16.msra.mxu0 %v1100
        %1269 = vmatpush.bf16.msra.mxu0 %v1099
        %1270 = vmatpush.bf16.msra.mxu0 %v1098
        %1271 = vmatpush.bf16.msra.mxu0 %v1097
        %1272 = vmatpush.bf16.msra.mxu0 %v1096
        %1273 = vmatpush.bf16.msra.mxu0 %v1095
        %1274 = vmatmul.bf16.gmra.mxu0 %v1265
        %v1275 = vpop.f32.mrf.mxu0
        %v1276 = vadd.f32 %v1061, %v1275
        %v1277 = vpop.f32.mrf.mxu0
        %1278 = vdwg.mxu0
        %v1279 = vmax.f32 %v1276, 0.0
        %v1280 = vpack.c.bf16 %v1279, %v1279
        %1281 = vmatpush.bf16.msra.mxu0 %v1168
        %1282 = vmatpush.bf16.msra.mxu0 %v1167
        %1283 = vmatpush.bf16.msra.mxu0 %v1166
        %1284 = vmatpush.bf16.msra.mxu0 %v1165
        %1285 = vmatpush.bf16.msra.mxu0 %v1164
        %1286 = vmatpush.bf16.msra.mxu0 %v1163
        %1287 = vmatpush.bf16.msra.mxu0 %v1162
        %1288 = vmatpush.bf16.msra.mxu0 %v1161
        %1289 = vmatmul.bf16.gmra.mxu0 %v1280
        %v1290 = vpop.f32.mrf.mxu0
        %v1291 = vadd.f32 %v1127, %v1290
        %v1292 = vpop.f32.mrf.mxu0
        %1293 = vdwg.mxu0
        %v1294 = vadd.f32 %v1224, %v1260
        %1295 = vset.pattern.permute.xlu0 2
        %1296 = vperm.xlu0 %1295, %v910
        %v1297 = vpop.permute.xlu0 %1296
        %vm1298 = vcmp.eq.s32.totalorder %v912, %v1297
        %v1299 = vsel %vm1298, 1, 0
        %v1300 = vcvt.s32.f32 %v1299
        %v1301 = vpack.c.bf16 %v1300, %v1300
        %v1303 = vsel %vm935, %v1301, 0
        %1305 = vmatpush.bf16.msra.mxu0 0
        %1306 = vmatpush.bf16.msra.mxu0 0
        %1307 = vmatpush.bf16.msra.mxu0 0
        %1308 = vmatpush.bf16.msra.mxu0 0
        %1309 = vmatpush.bf16.msra.mxu0 0
        %1310 = vmatpush.bf16.msra.mxu0 0
        %1311 = vmatpush.bf16.msra.mxu0 0
        %1312 = vmatpush.bf16.msra.mxu0 %v931
        %1313 = vmatmul.bf16.gmra.mxu0 %v1303
        %v1314 = vpop.f32.mrf.mxu0
        %v1315 = vadd.f32 0.0, %v1314
        %v1316 = vpop.f32.mrf.mxu0
        %1317 = vdwg.mxu0
        %1318 = vmatpush.bf16.msra.mxu0 0
        %1319 = vmatpush.bf16.msra.mxu0 0
        %1320 = vmatpush.bf16.msra.mxu0 0
        %1321 = vmatpush.bf16.msra.mxu0 0
        %1322 = vmatpush.bf16.msra.mxu0 0
        %1323 = vmatpush.bf16.msra.mxu0 0
        %1324 = vmatpush.bf16.msra.mxu0 0
        %1325 = vmatpush.bf16.msra.mxu0 %v932
        %1326 = vmatmul.bf16.gmra.mxu0 %v1303
        %v1327 = vpop.f32.mrf.mxu0
        %v1328 = vadd.f32 0.0, %v1327
        %v1329 = vpop.f32.mrf.mxu0
        %1330 = vdwg.mxu0
        %s1331 = scalar_lea.vmem %s625, 16 [#allocation2]
        %v1332 = vld [vmem:[%s1331] sm:$0xff]
        %1334 = vset.pattern.permute.xlu0 0
        %1335 = vperm.xlu0 %1334, %v1332
        %v1336 = vpop.permute.xlu0 %1335
        %v1338 = vmul.f32 %v1336, %v971
        %1339 = vset.pattern.permute.xlu0 1
        %1340 = vperm.xlu0 %1339, %v1332
        %v1341 = vpop.permute.xlu0 %1340
        %v1343 = vmul.f32 %v1341, %v977
        %v1344 = vadd.f32 %v1338, %v1343
        %1345 = vset.pattern.permute.xlu0 2
        %1346 = vperm.xlu0 %1345, %v1332
        %v1347 = vpop.permute.xlu0 %1346
        %v1349 = vmul.f32 %v1347, %v984
        %v1350 = vadd.f32 %v1344, %v1349
        %v1351 = vadd.f32 %v1350, %v988
        %v1352 = vmax.f32 %v1351, 0.0
        %v1353 = vpack.c.bf16 %v1352, %v1352
        %1354 = vmatpush.bf16.msra.mxu0 %v1035
        %1355 = vmatpush.bf16.msra.mxu0 %v1034
        %1356 = vmatpush.bf16.msra.mxu0 %v1033
        %1357 = vmatpush.bf16.msra.mxu0 %v1032
        %1358 = vmatpush.bf16.msra.mxu0 %v1031
        %1359 = vmatpush.bf16.msra.mxu0 %v1030
        %1360 = vmatpush.bf16.msra.mxu0 %v1029
        %1361 = vmatpush.bf16.msra.mxu0 %v1028
        %1362 = vmatmul.bf16.gmra.mxu0 %v1353
        %v1363 = vpop.f32.mrf.mxu0
        %v1364 = vadd.f32 %v994, %v1363
        %v1365 = vpop.f32.mrf.mxu0
        %1366 = vdwg.mxu0
        %v1367 = vsub.f32 %v907, %v1315
        %v1368 = vadd.f32 %v1367, %v1364
        %v1369 = vpack.c.bf16 %v1368, %v1368
        %1370 = vmatpush.bf16.msra.mxu0 %v1102
        %1371 = vmatpush.bf16.msra.mxu0 %v1101
        %1372 = vmatpush.bf16.msra.mxu0 %v1100
        %1373 = vmatpush.bf16.msra.mxu0 %v1099
        %1374 = vmatpush.bf16.msra.mxu0 %v1098
        %1375 = vmatpush.bf16.msra.mxu0 %v1097
        %1376 = vmatpush.bf16.msra.mxu0 %v1096
        %1377 = vmatpush.bf16.msra.mxu0 %v1095
        %1378 = vmatmul.bf16.gmra.mxu0 %v1369
        %v1379 = vpop.f32.mrf.mxu0
        %v1380 = vadd.f32 %v1061, %v1379
        %v1381 = vpop.f32.mrf.mxu0
        %1382 = vdwg.mxu0
        %v1383 = vmax.f32 %v1380, 0.0
        %v1384 = vpack.c.bf16 %v1383, %v1383
        %1385 = vmatpush.bf16.msra.mxu0 %v1168
        %1386 = vmatpush.bf16.msra.mxu0 %v1167
        %1387 = vmatpush.bf16.msra.mxu0 %v1166
        %1388 = vmatpush.bf16.msra.mxu0 %v1165
        %1389 = vmatpush.bf16.msra.mxu0 %v1164
        %1390 = vmatpush.bf16.msra.mxu0 %v1163
        %1391 = vmatpush.bf16.msra.mxu0 %v1162
        %1392 = vmatpush.bf16.msra.mxu0 %v1161
        %1393 = vmatmul.bf16.gmra.mxu0 %v1384
        %v1394 = vpop.f32.mrf.mxu0
        %v1395 = vadd.f32 %v1127, %v1394
        %v1396 = vpop.f32.mrf.mxu0
        %1397 = vdwg.mxu0
        %v1398 = vadd.f32 %v1328, %v1364
        %1399 = vset.pattern.permute.xlu0 3
        %1400 = vperm.xlu0 %1399, %v910
        %v1401 = vpop.permute.xlu0 %1400
        %vm1402 = vcmp.eq.s32.totalorder %v912, %v1401
        %v1403 = vsel %vm1402, 1, 0
        %v1404 = vcvt.s32.f32 %v1403
        %v1405 = vpack.c.bf16 %v1404, %v1404
        %v1407 = vsel %vm935, %v1405, 0
        %1409 = vmatpush.bf16.msra.mxu0 0
        %1410 = vmatpush.bf16.msra.mxu0 0
        %1411 = vmatpush.bf16.msra.mxu0 0
        %1412 = vmatpush.bf16.msra.mxu0 0
        %1413 = vmatpush.bf16.msra.mxu0 0
        %1414 = vmatpush.bf16.msra.mxu0 0
        %1415 = vmatpush.bf16.msra.mxu0 0
        %1416 = vmatpush.bf16.msra.mxu0 %v931
        %1417 = vmatmul.bf16.gmra.mxu0 %v1407
        %v1418 = vpop.f32.mrf.mxu0
        %v1419 = vadd.f32 0.0, %v1418
        %v1420 = vpop.f32.mrf.mxu0
        %1421 = vdwg.mxu0
        %1422 = vmatpush.bf16.msra.mxu0 0
        %1423 = vmatpush.bf16.msra.mxu0 0
        %1424 = vmatpush.bf16.msra.mxu0 0
        %1425 = vmatpush.bf16.msra.mxu0 0
        %1426 = vmatpush.bf16.msra.mxu0 0
        %1427 = vmatpush.bf16.msra.mxu0 0
        %1428 = vmatpush.bf16.msra.mxu0 0
        %1429 = vmatpush.bf16.msra.mxu0 %v932
        %1430 = vmatmul.bf16.gmra.mxu0 %v1407
        %v1431 = vpop.f32.mrf.mxu0
        %v1432 = vadd.f32 0.0, %v1431
        %v1433 = vpop.f32.mrf.mxu0
        %1434 = vdwg.mxu0
        %s1435 = scalar_lea.vmem %s625, 24 [#allocation2]
        %v1436 = vld [vmem:[%s1435] sm:$0xff]
        %1438 = vset.pattern.permute.xlu0 0
        %1439 = vperm.xlu0 %1438, %v1436
        %v1440 = vpop.permute.xlu0 %1439
        %v1442 = vmul.f32 %v1440, %v971
        %1443 = vset.pattern.permute.xlu0 1
        %1444 = vperm.xlu0 %1443, %v1436
        %v1445 = vpop.permute.xlu0 %1444
        %v1447 = vmul.f32 %v1445, %v977
        %v1448 = vadd.f32 %v1442, %v1447
        %1449 = vset.pattern.permute.xlu0 2
        %1450 = vperm.xlu0 %1449, %v1436
        %v1451 = vpop.permute.xlu0 %1450
        %v1453 = vmul.f32 %v1451, %v984
        %v1454 = vadd.f32 %v1448, %v1453
        %v1455 = vadd.f32 %v1454, %v988
        %v1456 = vmax.f32 %v1455, 0.0
        %v1457 = vpack.c.bf16 %v1456, %v1456
        %1458 = vmatpush.bf16.msra.mxu0 %v1035
        %1459 = vmatpush.bf16.msra.mxu0 %v1034
        %1460 = vmatpush.bf16.msra.mxu0 %v1033
        %1461 = vmatpush.bf16.msra.mxu0 %v1032
        %1462 = vmatpush.bf16.msra.mxu0 %v1031
        %1463 = vmatpush.bf16.msra.mxu0 %v1030
        %1464 = vmatpush.bf16.msra.mxu0 %v1029
        %1465 = vmatpush.bf16.msra.mxu0 %v1028
        %1466 = vmatmul.bf16.gmra.mxu0 %v1457
        %v1467 = vpop.f32.mrf.mxu0
        %v1468 = vadd.f32 %v994, %v1467
        %v1469 = vpop.f32.mrf.mxu0
        %1470 = vdwg.mxu0
        %v1471 = vsub.f32 %v907, %v1419
        %v1472 = vadd.f32 %v1471, %v1468
        %v1473 = vpack.c.bf16 %v1472, %v1472
        %1474 = vmatpush.bf16.msra.mxu0 %v1102
        %1475 = vmatpush.bf16.msra.mxu0 %v1101
        %1476 = vmatpush.bf16.msra.mxu0 %v1100
        %1477 = vmatpush.bf16.msra.mxu0 %v1099
        %1478 = vmatpush.bf16.msra.mxu0 %v1098
        %1479 = vmatpush.bf16.msra.mxu0 %v1097
        %1480 = vmatpush.bf16.msra.mxu0 %v1096
        %1481 = vmatpush.bf16.msra.mxu0 %v1095
        %1482 = vmatmul.bf16.gmra.mxu0 %v1473
        %v1483 = vpop.f32.mrf.mxu0
        %v1484 = vadd.f32 %v1061, %v1483
        %v1485 = vpop.f32.mrf.mxu0
        %1486 = vdwg.mxu0
        %v1487 = vmax.f32 %v1484, 0.0
        %v1488 = vpack.c.bf16 %v1487, %v1487
        %1489 = vmatpush.bf16.msra.mxu0 %v1168
        %1490 = vmatpush.bf16.msra.mxu0 %v1167
        %1491 = vmatpush.bf16.msra.mxu0 %v1166
        %1492 = vmatpush.bf16.msra.mxu0 %v1165
        %1493 = vmatpush.bf16.msra.mxu0 %v1164
        %1494 = vmatpush.bf16.msra.mxu0 %v1163
        %1495 = vmatpush.bf16.msra.mxu0 %v1162
        %1496 = vmatpush.bf16.msra.mxu0 %v1161
        %1497 = vmatmul.bf16.gmra.mxu0 %v1488
        %v1498 = vpop.f32.mrf.mxu0
        %v1499 = vadd.f32 %v1127, %v1498
        %v1500 = vpop.f32.mrf.mxu0
        %1501 = vdwg.mxu0
        %v1502 = vadd.f32 %v1432, %v1468
        %v1503 = vmax.f32 %v1187, %v1291
        %v1504 = vmax.f32 %v1503, %v1395
        %v1505 = vmax.f32 %v1504, %v1499
        %v1506 = vsub.f32 %v1187, %v1505
        %v1507 = vmul.f32 %v1506, 1.442695
        %v1508 = vpow.pop %v1507
        %v1509 = vadd.f32 %v1508, 0.0
        %v1510 = vmul.f32 %v1508, %v1190
        %v1511 = vadd.f32 %v1510, 0.0
        %v1512 = vsub.f32 %v1291, %v1505
        %v1513 = vmul.f32 %v1512, 1.442695
        %v1514 = vpow.pop %v1513
        %v1515 = vadd.f32 %v1509, %v1514
        %v1516 = vmul.f32 %v1514, %v1294
        %v1517 = vadd.f32 %v1511, %v1516
        %v1518 = vsub.f32 %v1395, %v1505
        %v1519 = vmul.f32 %v1518, 1.442695
        %v1520 = vpow.pop %v1519
        %v1521 = vadd.f32 %v1515, %v1520
        %v1522 = vmul.f32 %v1520, %v1398
        %v1523 = vadd.f32 %v1517, %v1522
        %v1524 = vsub.f32 %v1499, %v1505
        %v1525 = vmul.f32 %v1524, 1.442695
        %v1526 = vpow.pop %v1525
        %v1527 = vadd.f32 %v1521, %v1526
        %v1528 = vmul.f32 %v1526, %v1502
        %v1529 = vadd.f32 %v1523, %v1528
        %v1530 = vrcp.pop %v1527
        %v1531 = vmul.f32 %v1529, %v1530
        %v1532 = vpack.c.bf16 %v1531, %v1531
        %v1534 = vperm.slane %v818, 0
        %v1552 = vunpack.c.l.b16 %v802
        %v1553 = vunpack.c.l.b16 %v803
        %v1554 = vunpack.c.l.b16 %v804
        %v1555 = vunpack.c.l.b16 %v805
        %v1556 = vunpack.c.l.b16 %v806
        %v1557 = vunpack.c.l.b16 %v807
        %v1558 = vunpack.c.l.b16 %v808
        %v1559 = vunpack.c.l.b16 %v809
        %v1560 = vunpack.c.l.b16 %v810
        %v1561 = vunpack.c.l.b16 %v811
        %v1562 = vunpack.c.l.b16 %v812
        %v1563 = vunpack.c.l.b16 %v813
        %v1564 = vunpack.c.l.b16 %v814
        %v1565 = vunpack.c.l.b16 %v815
        %v1566 = vunpack.c.l.b16 %v816
        %v1567 = vunpack.c.l.b16 %v817
        %v1568 = vpack.c.b16 %v1553, %v1552
        %v1569 = vpack.c.b16 %v1555, %v1554
        %v1570 = vpack.c.b16 %v1557, %v1556
        %v1571 = vpack.c.b16 %v1559, %v1558
        %v1572 = vpack.c.b16 %v1561, %v1560
        %v1573 = vpack.c.b16 %v1563, %v1562
        %v1574 = vpack.c.b16 %v1565, %v1564
        %v1575 = vpack.c.b16 %v1567, %v1566
        %1584 = vmatpush.bf16.msra.mxu0 %v1575
        %1585 = vmatpush.bf16.msra.mxu0 %v1574
        %1586 = vmatpush.bf16.msra.mxu0 %v1573
        %1587 = vmatpush.bf16.msra.mxu0 %v1572
        %1588 = vmatpush.bf16.msra.mxu0 %v1571
        %1589 = vmatpush.bf16.msra.mxu0 %v1570
        %1590 = vmatpush.bf16.msra.mxu0 %v1569
        %1591 = vmatpush.bf16.msra.mxu0 %v1568
        %1592 = vmatmul.bf16.gmra.mxu0 %v1532
        %v1593 = vpop.f32.mrf.mxu0
        %v1594 = vadd.f32 %v1534, %v1593
        %v1595 = vpop.f32.mrf.mxu0
        %1596 = vdwg.mxu0
        %1597 = vst [vmem:[%s728] sm:$0xff] %v1594
        %p1598 = scmp.lt.s32.totalorder %s33, 1
        %s1599 = scalar_select %p1598, %s33, 1
        %p1600 = scmp.lt.s32.totalorder %s34, 1
        %s1601 = scalar_select %p1600, %s34, 1
        %s1602 = smul.addr %s1599, 2
        %s1603 = sadd.s32 %s1601, %s1602
        %s1604 = smul.addr %s1603, 8
        %s1605 = scalar_lea.vmem %s18, %s1604
        // Predicated region
        $region131: #{vtransformer_forward.3} parent=125 // pred_check
          %p1606 = pneg %p465
        $region132: #{vtransformer_forward.3} parent=125 // pred_check_branch
          %1608 = sbr.rel (%p1606) target = $region134
        $region133: #{vtransformer_forward.3} parent=125 // pred_region
          _
        $region134: #{vtransformer_forward.3} parent=125 // pred_fallthru
          _
      $region126: #{vtransformer_forward.3} parent=5 // pred_fallthru
        _
      %p1609 = scmp.le.s32.totalorder 2, %s24
      // Predicated region
      $region135: #{vtransformer_forward.3} parent=5 // pred_check
        %p1610 = pneg %p1609
      $region136: #{vtransformer_forward.3} parent=5 // pred_check_branch
        %1612 = sbr.rel (%p1610) target = $region138
      $region137: #{vtransformer_forward.3} parent=5 // pred_region
        %s1613 = ssub.s32 %s24, 2
        // Predicated region
        $region139: #{vtransformer_forward.3} parent=137 // pred_check
          %p1614 = pneg %p471
        $region140: #{vtransformer_forward.3} parent=137 // pred_check_branch
          %1616 = sbr.rel (%p1614) target = $region142
        $region141: #{vtransformer_forward.3} parent=137 // pred_region
          %p1617 = scmp.lt.s32.totalorder %s35, 1
          %s1618 = scalar_select %p1617, %s35, 1
          %p1619 = scmp.lt.s32.totalorder %s36, 1
          %s1620 = scalar_select %p1619, %s36, 1
          %s1621 = smul.addr %s1618, 2
          %s1622 = sadd.s32 %s1620, %s1621
          %s1623 = smul.addr %s1622, 8
          %s1624 = scalar_lea.vmem %s18, %s1623
        $region142: #{vtransformer_forward.3} parent=137 // pred_fallthru
          _
      $region138: #{vtransformer_forward.3} parent=5 // pred_fallthru
        _
    $region6: #{vtransformer_forward.3} parent=1 // loop_footer
      %s28 = sadd.s32 1, %s24
    $region7: #{vtransformer_forward.3} parent=1 // loop_footer_branch
      %23 = sbr.rel target = $region3
    $region8: #{vtransformer_forward.3} parent=1 // loop_exit
      _

</llo_original>
